<compile_context>
chip_gen: v5e
topology: v5e:2x2
jax: 0.10.0
libtpu: 0.0.40
codegen_flags: <defaults>
</compile_context>

<pallas_src>
import functools

import jax
import jax.numpy as jnp
from jax.experimental import pallas as pl
from jax.experimental.pallas import tpu as pltpu


OUT_PAD = 128  # lane-dense width of the fused cls+box head output


def rcnn_kernel(x_ref, w3_ref, b3_ref, wh_ref, bh_ref, out_ref, *, H, W, C):
    """One batch tile: 3x3 conv (shifted-FMA form) + ReLU + mean + fused heads.

    x_ref:  (bt, C, H*W)     f32, VMEM  -- lane-dense activation tile
    w3_ref: (C, 9*C)         f32, SMEM  -- conv weight, [co, ci*9 + kh*3 + kw]
    b3_ref: (C,)             f32, SMEM
    wh_ref: (C, OUT_PAD)     f32, VMEM  -- fused [cls | box] 1x1-conv weights
    bh_ref: (1, OUT_PAD)     f32, VMEM
    out_ref:(bt, 1, OUT_PAD) f32, VMEM
    """
    bt = x_ref.shape[0]
    HW = H * W

    xb = x_ref[...]                                            # (bt, C, HW) f32

    # Column (x-coordinate) masks for the horizontal halo; hoisted out of the
    # tap loop (JAX does not CSE broadcast_in_dim).
    col = jax.lax.broadcasted_iota(jnp.int32, (1, HW), 1) % W
    ok_left = jnp.broadcast_to(col >= 1, (bt, HW))             # valid lanes, dx = -1
    ok_right = jnp.broadcast_to(col <= W - 2, (bt, HW))        # valid lanes, dx = +1

    # --- 3x3 conv as shifted FMAs on lane-dense rows (no im2col, no scratch). --
    acc = [jnp.zeros((bt, HW), jnp.float32) for _ in range(C)]
    for ci in range(C):
        xi = xb[:, ci, :]                                      # (bt, HW)
        for kh in range(3):
            for kw in range(3):
                dy, dx = kh - 1, kw - 1
                s = dy * W + dx                                # tap[p] = xi[p + s]
                if s > 0:
                    tap = jnp.concatenate(
                        [xi[:, s:], jnp.zeros((bt, s), jnp.float32)], axis=1)
                elif s < 0:
                    tap = jnp.concatenate(
                        [jnp.zeros((bt, -s), jnp.float32), xi[:, :HW + s]], axis=1)
                else:
                    tap = xi
                # vertical (dy) halo is zero-filled by the concat above; only the
                # horizontal (dx) wrap across image rows needs masking.
                if dx == -1:
                    tap = jnp.where(ok_left, tap, 0.0)
                elif dx == 1:
                    tap = jnp.where(ok_right, tap, 0.0)
                k = ci * 9 + kh * 3 + kw
                for co in range(C):                            # scalar-weighted FMAs (VPU)
                    acc[co] = acc[co] + w3_ref[co, k] * tap

    # --- bias + ReLU (f32 VPU), global mean (lane-axis reduce), fused heads. --
    whv = wh_ref[...]                                          # (C, OUT_PAD)
    head = jnp.broadcast_to(bh_ref[...], (bt, OUT_PAD))
    inv_hw = 1.0 / HW
    for co in range(C):
        act = jnp.maximum(acc[co] + b3_ref[co], 0.0)           # (bt, HW)
        pooled = jnp.sum(act, axis=1, keepdims=True) * inv_hw  # (bt, 1)
        head = head + pooled * whv[co:co + 1, :]               # rank-1 FMA, 128 lanes
    out_ref[...] = head.reshape(bt, 1, OUT_PAD)


def _vmem_limit_bytes():
    """Per-generation scoped VMEM limit (16 MiB on 64 MiB v7x, 32 MiB on v5e/v6e)."""
    cap = 64 * 1024 * 1024
    try:
        cap = int(getattr(pltpu.get_tpu_info(), "vmem_capacity_bytes", cap))
    except Exception:
        pass
    return max(16 * 1024 * 1024, min(32 * 1024 * 1024, cap // 4))


def _pick_batch_tile(B, C, HW, vmem_limit):
    """Largest divisor of B that fits the VMEM budget, keeping >= 2 grid steps."""
    # f32 bytes live per batch element per grid step: double-buffered input block
    # (sublanes padded C -> 8), double-buffered output row, conv temporaries.
    per_b = 4 * (2 * max(C, 8) * HW + 2 * OUT_PAD + (C + 4) * HW)
    cap = max(1, min(128, (vmem_limit // 2) // per_b))
    if B >= 2:
        cap = min(cap, B // 2)      # >= 2 grid steps so v7x megacore can shard them
    bt = 1
    for d in range(1, min(cap, B) + 1):
        if B % d == 0:
            bt = d
    return bt


def rcnn_forward(x_nchw, params, *, batch_tile=None):
    """x_nchw: (B, C, H, W) float32. Returns (pred_cls (B, NC), pred_box (B, 4))."""
    w3, b3, wc, bc, wb, bb = params          # PyTorch layouts: OIHW / (out, in)
    B, C, H, W = x_nchw.shape
    NC = wc.shape[0]
    n_out = NC + 4
    assert n_out <= OUT_PAD
    HW = H * W

    # Lane-dense view of the NATIVE NCHW activation (free reshape, no HBM copy).
    x = x_nchw.reshape(B, C, HW).astype(jnp.float32)

    # Parameter prep (tiny, constant-folded under jit).  All f32: the kernel is
    # VPU/HBM-bound (not MXU-bound) and v5e's VPU has no bf16 path.
    w3_s = w3.reshape(C, 9 * C).astype(jnp.float32)       # [co, ci*9 + kh*3 + kw]
    b3_s = b3.astype(jnp.float32)
    # Fused heads: (C, NC+4) zero-padded to a lane-dense 128-wide output.
    wh = jnp.pad(jnp.concatenate([wc.T, wb.T], axis=1).astype(jnp.float32),
                 ((0, 0), (0, OUT_PAD - n_out)))
    bh = jnp.pad(jnp.concatenate([bc, bb]).reshape(1, n_out).astype(jnp.float32),
                 ((0, 0), (0, OUT_PAD - n_out)))

    vmem_limit = _vmem_limit_bytes()
    bt = _pick_batch_tile(B, C, HW, vmem_limit) if batch_tile is None else batch_tile
    assert B % bt == 0
    grid = (B // bt,)

    flops = int(2 * B * HW * 9 * C * C + 2 * B * C * OUT_PAD)
    bytes_accessed = int(x.size * 4 + w3_s.size * 4 + b3_s.size * 4
                         + wh.size * 4 + bh.size * 4 + B * OUT_PAD * 4)

    kernel = functools.partial(rcnn_kernel, H=H, W=W, C=C)

    out = pl.pallas_call(
        kernel,
        out_shape=jax.ShapeDtypeStruct((B, 1, OUT_PAD), jnp.float32),
        grid=grid,
        in_specs=[
            # activation tile: lane-dense, last two dims equal the full array dims
            pl.BlockSpec((bt, C, HW), lambda b: (b, 0, 0)),
            # conv weight / bias as SMEM scalar tables
            pl.BlockSpec(memory_space=pltpu.MemorySpace.SMEM),
            pl.BlockSpec(memory_space=pltpu.MemorySpace.SMEM),
            # fused head weight / bias, resident in VMEM across all grid steps
            pl.BlockSpec((C, OUT_PAD), lambda b: (0, 0)),
            pl.BlockSpec((1, OUT_PAD), lambda b: (0, 0)),
        ],
        out_specs=pl.BlockSpec((bt, 1, OUT_PAD), lambda b: (b, 0, 0)),
        compiler_params=pltpu.CompilerParams(
            dimension_semantics=("parallel",),        # megacore-shardable on v7x
            vmem_limit_bytes=vmem_limit),             # 16 MiB (v7x) / 32 MiB (v5e/v6e)
        cost_estimate=pl.CostEstimate(flops=flops, transcendentals=0,
                                      bytes_accessed=bytes_accessed),
        # TODO(synk): if xprof shows exposed input DMA at large batch_tile, set
        # pipeline_mode=pl.Buffered(3) on the activation BlockSpec.
    )(x, w3_s, b3_s, wh, bh)

    out = out.reshape(B, OUT_PAD)
    return out[:, :NC], out[:, NC:NC + 4]


def init_params(key, in_channels, num_classes_plus_1):
    """Deterministic synthetic parameters in PyTorch layouts (not a checkpoint)."""
    k = jax.random.split(key, 6)
    C, NC = in_channels, num_classes_plus_1
    w3 = jax.random.normal(k[0], (C, C, 3, 3), jnp.float32) * 0.1   # OIHW
    b3 = jax.random.normal(k[1], (C,), jnp.float32) * 0.1
    wc = jax.random.normal(k[2], (NC, C), jnp.float32) * 0.1        # 1x1 conv: (out, in)
    bc = jax.random.normal(k[3], (NC,), jnp.float32) * 0.1
    wb = jax.random.normal(k[4], (4, C), jnp.float32) * 0.1
    bb = jax.random.normal(k[5], (4,), jnp.float32) * 0.1
    return (w3, b3, wc, bc, wb, bb)


def ref_forward(x_nchw, params):
    """Pure-JAX f32 reference reproducing the PyTorch forward."""
    w3, b3, wc, bc, wb, bb = params
    y = jax.lax.conv_general_dilated(
        x_nchw, w3, window_strides=(1, 1), padding=((1, 1), (1, 1)),
        dimension_numbers=('NCHW', 'OIHW', 'NCHW'))
    y = jnp.maximum(y + b3[None, :, None, None], 0.0)
    pooled = y.mean(axis=(2, 3))                       # (B, C)
    return pooled @ wc.T + bc, pooled @ wb.T + bb


if __name__ == "__main__":
    B, C, H, W = 2, 4, 16, 16          # cfg['network']['RCNN']['in_channels'] = 4
    num_classes = 3                     # cfg['network']['RCNN']['num_classes'] = 3
    NC = num_classes + 1                # module adds a background class

    key = jax.random.PRNGKey(0)
    kx, kp = jax.random.split(key)
    x = jax.random.normal(kx, (B, C, H, W), jnp.float32)
    params = init_params(kp, C, NC)

    pred_cls, pred_box = jax.jit(rcnn_forward)(x, params)
    pred_cls = jax.block_until_ready(pred_cls)
    pred_box = jax.block_until_ready(pred_box)

    ref_cls, ref_box = ref_forward(x, params)
    assert pred_cls.shape == (B, NC) and pred_box.shape == (B, 4)
    # All-f32 kernel path -> tight parity with the pure-f32 reference.
    assert jnp.allclose(pred_cls, ref_cls, atol=1e-3, rtol=1e-3), \
        float(jnp.max(jnp.abs(pred_cls - ref_cls)))
    assert jnp.allclose(pred_box, ref_box, atol=1e-3, rtol=1e-3), \
        float(jnp.max(jnp.abs(pred_box - ref_box)))

    print("KERNEL_OK")
</pallas_src>

<mosaic_0001>
module attributes {stable_mosaic.version = 11 : i64} {
  func.func @rcnn_kernel(%arg0: i32, %arg1: memref<1x4x256xf32, #tpu.memory_space<vmem>>, %arg2: memref<4x36xf32, #tpu.memory_space<smem>>, %arg3: memref<4xf32, #tpu.memory_space<smem>>, %arg4: memref<4x128xf32, #tpu.memory_space<vmem>>, %arg5: memref<1x128xf32, #tpu.memory_space<vmem>>, %arg6: memref<1x1x128xf32, #tpu.memory_space<vmem>>) attributes {dimension_semantics = [#tpu.dimension_semantics<parallel>], iteration_bounds = array<i64: 2>, scalar_prefetch = 0 : i64, scratch_operands = 0 : i64, tpu.core_type = #tpu.core_type<tc>, window_params = [{transform_indices = @transform_0, window_bounds = array<i64: 1, 4, 256>}, {transform_indices = @transform_1, window_bounds = array<i64: 4, 36>}, {transform_indices = @transform_2, window_bounds = array<i64: 4>}, {pipeline_mode = #tpu.pipeline_mode<synchronous>, transform_indices = @transform_3, window_bounds = array<i64: 4, 128>}, {pipeline_mode = #tpu.pipeline_mode<synchronous>, transform_indices = @transform_4, window_bounds = array<i64: 1, 128>}, {transform_indices = @transform_5, window_bounds = array<i64: 1, 1, 128>}]} {
    %c0 = arith.constant 0 : index
    %c0_0 = arith.constant 0 : index
    %c0_1 = arith.constant 0 : index
    %0 = vector.load %arg1[%c0, %c0_0, %c0_1] : memref<1x4x256xf32, #tpu.memory_space<vmem>>, vector<1x4x256xf32>
    %1 = tpu.iota {dimensions = array<i32: 1>} : vector<1x256xi32>
    %c16_i32 = arith.constant 16 : i32
    %c0_i32 = arith.constant 0 : i32
    %2 = arith.cmpi eq, %c16_i32, %c0_i32 : i32
    %c1_i32 = arith.constant 1 : i32
    %3 = arith.select %2, %c1_i32, %c16_i32 : i32
    %4 = vector.broadcast %3 : i32 to vector<1x256xi32>
    %5 = arith.remsi %1, %4 : vector<1x256xi32>
    %c0_i32_2 = arith.constant 0 : i32
    %6 = vector.broadcast %c0_i32_2 : i32 to vector<1x256xi32>
    %7 = arith.cmpi ne, %5, %6 : vector<1x256xi32>
    %c0_i32_3 = arith.constant 0 : i32
    %8 = vector.broadcast %c0_i32_3 : i32 to vector<1x256xi32>
    %9 = arith.cmpi slt, %5, %8 : vector<1x256xi32>
    %c0_i32_4 = arith.constant 0 : i32
    %10 = arith.cmpi slt, %3, %c0_i32_4 : i32
    %11 = vector.broadcast %10 : i1 to vector<1x256xi1>
    %12 = vector.broadcast %11 : vector<1x256xi1> to vector<1x256xi1>
    %13 = arith.xori %9, %12 : vector<1x256xi1>
    %14 = arith.andi %13, %7 : vector<1x256xi1>
    %15 = vector.broadcast %3 : i32 to vector<1x256xi32>
    %16 = arith.addi %5, %15 : vector<1x256xi32>
    %17 = arith.select %14, %16, %5 : vector<1x256xi1>, vector<1x256xi32>
    %c1_i32_5 = arith.constant 1 : i32
    %18 = vector.broadcast %c1_i32_5 : i32 to vector<1x256xi32>
    %19 = arith.cmpi sge, %17, %18 : vector<1x256xi32>
    %c14_i32 = arith.constant 14 : i32
    %20 = vector.broadcast %c14_i32 : i32 to vector<1x256xi32>
    %21 = arith.cmpi sle, %17, %20 : vector<1x256xi32>
    %cst = arith.constant 0.000000e+00 : f32
    %22 = vector.broadcast %cst : f32 to vector<1x256xf32>
    %cst_6 = arith.constant 0.000000e+00 : f32
    %23 = vector.broadcast %cst_6 : f32 to vector<1x256xf32>
    %cst_7 = arith.constant 0.000000e+00 : f32
    %24 = vector.broadcast %cst_7 : f32 to vector<1x256xf32>
    %cst_8 = arith.constant 0.000000e+00 : f32
    %25 = vector.broadcast %cst_8 : f32 to vector<1x256xf32>
    %26 = vector.extract_strided_slice %0 {offsets = [0, 0, 0], sizes = [1, 1, 256], strides = [1, 1, 1]} : vector<1x4x256xf32> to vector<1x1x256xf32>
    %27 = vector.shape_cast %26 : vector<1x1x256xf32> to vector<1x256xf32>
    %cst_9 = arith.constant 0.000000e+00 : f32
    %28 = vector.broadcast %cst_9 : f32 to vector<1x17xf32>
    %29 = vector.extract_strided_slice %27 {offsets = [0, 0], sizes = [1, 239], strides = [1, 1]} : vector<1x256xf32> to vector<1x239xf32>
    %30 = tpu.concatenate %28, %29 in 1 : vector<1x17xf32>, vector<1x239xf32> -> vector<1x256xf32>
    %cst_10 = arith.constant 0.000000e+00 : f32
    %31 = vector.broadcast %cst_10 : f32 to vector<1x256xf32>
    %32 = arith.select %19, %30, %31 : vector<1x256xi1>, vector<1x256xf32>
    %c0_11 = arith.constant 0 : index
    %c0_12 = arith.constant 0 : index
    %33 = memref.load %arg2[%c0_11, %c0_12] : memref<4x36xf32, #tpu.memory_space<smem>>
    %34 = vector.broadcast %33 : f32 to vector<1x256xf32>
    %35 = arith.mulf %34, %32 : vector<1x256xf32>
    %36 = arith.addf %22, %35 : vector<1x256xf32>
    %c1 = arith.constant 1 : index
    %c0_13 = arith.constant 0 : index
    %37 = memref.load %arg2[%c1, %c0_13] : memref<4x36xf32, #tpu.memory_space<smem>>
    %38 = vector.broadcast %37 : f32 to vector<1x256xf32>
    %39 = arith.mulf %38, %32 : vector<1x256xf32>
    %40 = arith.addf %23, %39 : vector<1x256xf32>
    %c2 = arith.constant 2 : index
    %c0_14 = arith.constant 0 : index
    %41 = memref.load %arg2[%c2, %c0_14] : memref<4x36xf32, #tpu.memory_space<smem>>
    %42 = vector.broadcast %41 : f32 to vector<1x256xf32>
    %43 = arith.mulf %42, %32 : vector<1x256xf32>
    %44 = arith.addf %24, %43 : vector<1x256xf32>
    %c3 = arith.constant 3 : index
    %c0_15 = arith.constant 0 : index
    %45 = memref.load %arg2[%c3, %c0_15] : memref<4x36xf32, #tpu.memory_space<smem>>
    %46 = vector.broadcast %45 : f32 to vector<1x256xf32>
    %47 = arith.mulf %46, %32 : vector<1x256xf32>
    %48 = arith.addf %25, %47 : vector<1x256xf32>
    %cst_16 = arith.constant 0.000000e+00 : f32
    %49 = vector.broadcast %cst_16 : f32 to vector<1x16xf32>
    %50 = vector.extract_strided_slice %27 {offsets = [0, 0], sizes = [1, 240], strides = [1, 1]} : vector<1x256xf32> to vector<1x240xf32>
    %51 = tpu.concatenate %49, %50 in 1 : vector<1x16xf32>, vector<1x240xf32> -> vector<1x256xf32>
    %c0_17 = arith.constant 0 : index
    %c1_18 = arith.constant 1 : index
    %52 = memref.load %arg2[%c0_17, %c1_18] : memref<4x36xf32, #tpu.memory_space<smem>>
    %53 = vector.broadcast %52 : f32 to vector<1x256xf32>
    %54 = arith.mulf %53, %51 : vector<1x256xf32>
    %55 = arith.addf %36, %54 : vector<1x256xf32>
    %c1_19 = arith.constant 1 : index
    %c1_20 = arith.constant 1 : index
    %56 = memref.load %arg2[%c1_19, %c1_20] : memref<4x36xf32, #tpu.memory_space<smem>>
    %57 = vector.broadcast %56 : f32 to vector<1x256xf32>
    %58 = arith.mulf %57, %51 : vector<1x256xf32>
    %59 = arith.addf %40, %58 : vector<1x256xf32>
    %c2_21 = arith.constant 2 : index
    %c1_22 = arith.constant 1 : index
    %60 = memref.load %arg2[%c2_21, %c1_22] : memref<4x36xf32, #tpu.memory_space<smem>>
    %61 = vector.broadcast %60 : f32 to vector<1x256xf32>
    %62 = arith.mulf %61, %51 : vector<1x256xf32>
    %63 = arith.addf %44, %62 : vector<1x256xf32>
    %c3_23 = arith.constant 3 : index
    %c1_24 = arith.constant 1 : index
    %64 = memref.load %arg2[%c3_23, %c1_24] : memref<4x36xf32, #tpu.memory_space<smem>>
    %65 = vector.broadcast %64 : f32 to vector<1x256xf32>
    %66 = arith.mulf %65, %51 : vector<1x256xf32>
    %67 = arith.addf %48, %66 : vector<1x256xf32>
    %cst_25 = arith.constant 0.000000e+00 : f32
    %68 = vector.broadcast %cst_25 : f32 to vector<1x15xf32>
    %69 = vector.extract_strided_slice %27 {offsets = [0, 0], sizes = [1, 241], strides = [1, 1]} : vector<1x256xf32> to vector<1x241xf32>
    %70 = tpu.concatenate %68, %69 in 1 : vector<1x15xf32>, vector<1x241xf32> -> vector<1x256xf32>
    %cst_26 = arith.constant 0.000000e+00 : f32
    %71 = vector.broadcast %cst_26 : f32 to vector<1x256xf32>
    %72 = arith.select %21, %70, %71 : vector<1x256xi1>, vector<1x256xf32>
    %c0_27 = arith.constant 0 : index
    %c2_28 = arith.constant 2 : index
    %73 = memref.load %arg2[%c0_27, %c2_28] : memref<4x36xf32, #tpu.memory_space<smem>>
    %74 = vector.broadcast %73 : f32 to vector<1x256xf32>
    %75 = arith.mulf %74, %72 : vector<1x256xf32>
    %76 = arith.addf %55, %75 : vector<1x256xf32>
    %c1_29 = arith.constant 1 : index
    %c2_30 = arith.constant 2 : index
    %77 = memref.load %arg2[%c1_29, %c2_30] : memref<4x36xf32, #tpu.memory_space<smem>>
    %78 = vector.broadcast %77 : f32 to vector<1x256xf32>
    %79 = arith.mulf %78, %72 : vector<1x256xf32>
    %80 = arith.addf %59, %79 : vector<1x256xf32>
    %c2_31 = arith.constant 2 : index
    %c2_32 = arith.constant 2 : index
    %81 = memref.load %arg2[%c2_31, %c2_32] : memref<4x36xf32, #tpu.memory_space<smem>>
    %82 = vector.broadcast %81 : f32 to vector<1x256xf32>
    %83 = arith.mulf %82, %72 : vector<1x256xf32>
    %84 = arith.addf %63, %83 : vector<1x256xf32>
    %c3_33 = arith.constant 3 : index
    %c2_34 = arith.constant 2 : index
    %85 = memref.load %arg2[%c3_33, %c2_34] : memref<4x36xf32, #tpu.memory_space<smem>>
    %86 = vector.broadcast %85 : f32 to vector<1x256xf32>
    %87 = arith.mulf %86, %72 : vector<1x256xf32>
    %88 = arith.addf %67, %87 : vector<1x256xf32>
    %cst_35 = arith.constant 0.000000e+00 : f32
    %89 = vector.broadcast %cst_35 : f32 to vector<1x1xf32>
    %90 = vector.extract_strided_slice %27 {offsets = [0, 0], sizes = [1, 255], strides = [1, 1]} : vector<1x256xf32> to vector<1x255xf32>
    %91 = tpu.concatenate %89, %90 in 1 : vector<1x1xf32>, vector<1x255xf32> -> vector<1x256xf32>
    %cst_36 = arith.constant 0.000000e+00 : f32
    %92 = vector.broadcast %cst_36 : f32 to vector<1x256xf32>
    %93 = arith.select %19, %91, %92 : vector<1x256xi1>, vector<1x256xf32>
    %c0_37 = arith.constant 0 : index
    %c3_38 = arith.constant 3 : index
    %94 = memref.load %arg2[%c0_37, %c3_38] : memref<4x36xf32, #tpu.memory_space<smem>>
    %95 = vector.broadcast %94 : f32 to vector<1x256xf32>
    %96 = arith.mulf %95, %93 : vector<1x256xf32>
    %97 = arith.addf %76, %96 : vector<1x256xf32>
    %c1_39 = arith.constant 1 : index
    %c3_40 = arith.constant 3 : index
    %98 = memref.load %arg2[%c1_39, %c3_40] : memref<4x36xf32, #tpu.memory_space<smem>>
    %99 = vector.broadcast %98 : f32 to vector<1x256xf32>
    %100 = arith.mulf %99, %93 : vector<1x256xf32>
    %101 = arith.addf %80, %100 : vector<1x256xf32>
    %c2_41 = arith.constant 2 : index
    %c3_42 = arith.constant 3 : index
    %102 = memref.load %arg2[%c2_41, %c3_42] : memref<4x36xf32, #tpu.memory_space<smem>>
    %103 = vector.broadcast %102 : f32 to vector<1x256xf32>
    %104 = arith.mulf %103, %93 : vector<1x256xf32>
    %105 = arith.addf %84, %104 : vector<1x256xf32>
    %c3_43 = arith.constant 3 : index
    %c3_44 = arith.constant 3 : index
    %106 = memref.load %arg2[%c3_43, %c3_44] : memref<4x36xf32, #tpu.memory_space<smem>>
    %107 = vector.broadcast %106 : f32 to vector<1x256xf32>
    %108 = arith.mulf %107, %93 : vector<1x256xf32>
    %109 = arith.addf %88, %108 : vector<1x256xf32>
    %c0_45 = arith.constant 0 : index
    %c4 = arith.constant 4 : index
    %110 = memref.load %arg2[%c0_45, %c4] : memref<4x36xf32, #tpu.memory_space<smem>>
    %111 = vector.broadcast %110 : f32 to vector<1x256xf32>
    %112 = arith.mulf %111, %27 : vector<1x256xf32>
    %113 = arith.addf %97, %112 : vector<1x256xf32>
    %c1_46 = arith.constant 1 : index
    %c4_47 = arith.constant 4 : index
    %114 = memref.load %arg2[%c1_46, %c4_47] : memref<4x36xf32, #tpu.memory_space<smem>>
    %115 = vector.broadcast %114 : f32 to vector<1x256xf32>
    %116 = arith.mulf %115, %27 : vector<1x256xf32>
    %117 = arith.addf %101, %116 : vector<1x256xf32>
    %c2_48 = arith.constant 2 : index
    %c4_49 = arith.constant 4 : index
    %118 = memref.load %arg2[%c2_48, %c4_49] : memref<4x36xf32, #tpu.memory_space<smem>>
    %119 = vector.broadcast %118 : f32 to vector<1x256xf32>
    %120 = arith.mulf %119, %27 : vector<1x256xf32>
    %121 = arith.addf %105, %120 : vector<1x256xf32>
    %c3_50 = arith.constant 3 : index
    %c4_51 = arith.constant 4 : index
    %122 = memref.load %arg2[%c3_50, %c4_51] : memref<4x36xf32, #tpu.memory_space<smem>>
    %123 = vector.broadcast %122 : f32 to vector<1x256xf32>
    %124 = arith.mulf %123, %27 : vector<1x256xf32>
    %125 = arith.addf %109, %124 : vector<1x256xf32>
    %126 = vector.extract_strided_slice %27 {offsets = [0, 1], sizes = [1, 255], strides = [1, 1]} : vector<1x256xf32> to vector<1x255xf32>
    %cst_52 = arith.constant 0.000000e+00 : f32
    %127 = vector.broadcast %cst_52 : f32 to vector<1x1xf32>
    %128 = tpu.concatenate %126, %127 in 1 : vector<1x255xf32>, vector<1x1xf32> -> vector<1x256xf32>
    %cst_53 = arith.constant 0.000000e+00 : f32
    %129 = vector.broadcast %cst_53 : f32 to vector<1x256xf32>
    %130 = arith.select %21, %128, %129 : vector<1x256xi1>, vector<1x256xf32>
    %c0_54 = arith.constant 0 : index
    %c5 = arith.constant 5 : index
    %131 = memref.load %arg2[%c0_54, %c5] : memref<4x36xf32, #tpu.memory_space<smem>>
    %132 = vector.broadcast %131 : f32 to vector<1x256xf32>
    %133 = arith.mulf %132, %130 : vector<1x256xf32>
    %134 = arith.addf %113, %133 : vector<1x256xf32>
    %c1_55 = arith.constant 1 : index
    %c5_56 = arith.constant 5 : index
    %135 = memref.load %arg2[%c1_55, %c5_56] : memref<4x36xf32, #tpu.memory_space<smem>>
    %136 = vector.broadcast %135 : f32 to vector<1x256xf32>
    %137 = arith.mulf %136, %130 : vector<1x256xf32>
    %138 = arith.addf %117, %137 : vector<1x256xf32>
    %c2_57 = arith.constant 2 : index
    %c5_58 = arith.constant 5 : index
    %139 = memref.load %arg2[%c2_57, %c5_58] : memref<4x36xf32, #tpu.memory_space<smem>>
    %140 = vector.broadcast %139 : f32 to vector<1x256xf32>
    %141 = arith.mulf %140, %130 : vector<1x256xf32>
    %142 = arith.addf %121, %141 : vector<1x256xf32>
    %c3_59 = arith.constant 3 : index
    %c5_60 = arith.constant 5 : index
    %143 = memref.load %arg2[%c3_59, %c5_60] : memref<4x36xf32, #tpu.memory_space<smem>>
    %144 = vector.broadcast %143 : f32 to vector<1x256xf32>
    %145 = arith.mulf %144, %130 : vector<1x256xf32>
    %146 = arith.addf %125, %145 : vector<1x256xf32>
    %147 = vector.extract_strided_slice %27 {offsets = [0, 15], sizes = [1, 241], strides = [1, 1]} : vector<1x256xf32> to vector<1x241xf32>
    %cst_61 = arith.constant 0.000000e+00 : f32
    %148 = vector.broadcast %cst_61 : f32 to vector<1x15xf32>
    %149 = tpu.concatenate %147, %148 in 1 : vector<1x241xf32>, vector<1x15xf32> -> vector<1x256xf32>
    %cst_62 = arith.constant 0.000000e+00 : f32
    %150 = vector.broadcast %cst_62 : f32 to vector<1x256xf32>
    %151 = arith.select %19, %149, %150 : vector<1x256xi1>, vector<1x256xf32>
    %c0_63 = arith.constant 0 : index
    %c6 = arith.constant 6 : index
    %152 = memref.load %arg2[%c0_63, %c6] : memref<4x36xf32, #tpu.memory_space<smem>>
    %153 = vector.broadcast %152 : f32 to vector<1x256xf32>
    %154 = arith.mulf %153, %151 : vector<1x256xf32>
    %155 = arith.addf %134, %154 : vector<1x256xf32>
    %c1_64 = arith.constant 1 : index
    %c6_65 = arith.constant 6 : index
    %156 = memref.load %arg2[%c1_64, %c6_65] : memref<4x36xf32, #tpu.memory_space<smem>>
    %157 = vector.broadcast %156 : f32 to vector<1x256xf32>
    %158 = arith.mulf %157, %151 : vector<1x256xf32>
    %159 = arith.addf %138, %158 : vector<1x256xf32>
    %c2_66 = arith.constant 2 : index
    %c6_67 = arith.constant 6 : index
    %160 = memref.load %arg2[%c2_66, %c6_67] : memref<4x36xf32, #tpu.memory_space<smem>>
    %161 = vector.broadcast %160 : f32 to vector<1x256xf32>
    %162 = arith.mulf %161, %151 : vector<1x256xf32>
    %163 = arith.addf %142, %162 : vector<1x256xf32>
    %c3_68 = arith.constant 3 : index
    %c6_69 = arith.constant 6 : index
    %164 = memref.load %arg2[%c3_68, %c6_69] : memref<4x36xf32, #tpu.memory_space<smem>>
    %165 = vector.broadcast %164 : f32 to vector<1x256xf32>
    %166 = arith.mulf %165, %151 : vector<1x256xf32>
    %167 = arith.addf %146, %166 : vector<1x256xf32>
    %168 = vector.extract_strided_slice %27 {offsets = [0, 16], sizes = [1, 240], strides = [1, 1]} : vector<1x256xf32> to vector<1x240xf32>
    %cst_70 = arith.constant 0.000000e+00 : f32
    %169 = vector.broadcast %cst_70 : f32 to vector<1x16xf32>
    %170 = tpu.concatenate %168, %169 in 1 : vector<1x240xf32>, vector<1x16xf32> -> vector<1x256xf32>
    %c0_71 = arith.constant 0 : index
    %c7 = arith.constant 7 : index
    %171 = memref.load %arg2[%c0_71, %c7] : memref<4x36xf32, #tpu.memory_space<smem>>
    %172 = vector.broadcast %171 : f32 to vector<1x256xf32>
    %173 = arith.mulf %172, %170 : vector<1x256xf32>
    %174 = arith.addf %155, %173 : vector<1x256xf32>
    %c1_72 = arith.constant 1 : index
    %c7_73 = arith.constant 7 : index
    %175 = memref.load %arg2[%c1_72, %c7_73] : memref<4x36xf32, #tpu.memory_space<smem>>
    %176 = vector.broadcast %175 : f32 to vector<1x256xf32>
    %177 = arith.mulf %176, %170 : vector<1x256xf32>
    %178 = arith.addf %159, %177 : vector<1x256xf32>
    %c2_74 = arith.constant 2 : index
    %c7_75 = arith.constant 7 : index
    %179 = memref.load %arg2[%c2_74, %c7_75] : memref<4x36xf32, #tpu.memory_space<smem>>
    %180 = vector.broadcast %179 : f32 to vector<1x256xf32>
    %181 = arith.mulf %180, %170 : vector<1x256xf32>
    %182 = arith.addf %163, %181 : vector<1x256xf32>
    %c3_76 = arith.constant 3 : index
    %c7_77 = arith.constant 7 : index
    %183 = memref.load %arg2[%c3_76, %c7_77] : memref<4x36xf32, #tpu.memory_space<smem>>
    %184 = vector.broadcast %183 : f32 to vector<1x256xf32>
    %185 = arith.mulf %184, %170 : vector<1x256xf32>
    %186 = arith.addf %167, %185 : vector<1x256xf32>
    %187 = vector.extract_strided_slice %27 {offsets = [0, 17], sizes = [1, 239], strides = [1, 1]} : vector<1x256xf32> to vector<1x239xf32>
    %cst_78 = arith.constant 0.000000e+00 : f32
    %188 = vector.broadcast %cst_78 : f32 to vector<1x17xf32>
    %189 = tpu.concatenate %187, %188 in 1 : vector<1x239xf32>, vector<1x17xf32> -> vector<1x256xf32>
    %cst_79 = arith.constant 0.000000e+00 : f32
    %190 = vector.broadcast %cst_79 : f32 to vector<1x256xf32>
    %191 = arith.select %21, %189, %190 : vector<1x256xi1>, vector<1x256xf32>
    %c0_80 = arith.constant 0 : index
    %c8 = arith.constant 8 : index
    %192 = memref.load %arg2[%c0_80, %c8] : memref<4x36xf32, #tpu.memory_space<smem>>
    %193 = vector.broadcast %192 : f32 to vector<1x256xf32>
    %194 = arith.mulf %193, %191 : vector<1x256xf32>
    %195 = arith.addf %174, %194 : vector<1x256xf32>
    %c1_81 = arith.constant 1 : index
    %c8_82 = arith.constant 8 : index
    %196 = memref.load %arg2[%c1_81, %c8_82] : memref<4x36xf32, #tpu.memory_space<smem>>
    %197 = vector.broadcast %196 : f32 to vector<1x256xf32>
    %198 = arith.mulf %197, %191 : vector<1x256xf32>
    %199 = arith.addf %178, %198 : vector<1x256xf32>
    %c2_83 = arith.constant 2 : index
    %c8_84 = arith.constant 8 : index
    %200 = memref.load %arg2[%c2_83, %c8_84] : memref<4x36xf32, #tpu.memory_space<smem>>
    %201 = vector.broadcast %200 : f32 to vector<1x256xf32>
    %202 = arith.mulf %201, %191 : vector<1x256xf32>
    %203 = arith.addf %182, %202 : vector<1x256xf32>
    %c3_85 = arith.constant 3 : index
    %c8_86 = arith.constant 8 : index
    %204 = memref.load %arg2[%c3_85, %c8_86] : memref<4x36xf32, #tpu.memory_space<smem>>
    %205 = vector.broadcast %204 : f32 to vector<1x256xf32>
    %206 = arith.mulf %205, %191 : vector<1x256xf32>
    %207 = arith.addf %186, %206 : vector<1x256xf32>
    %208 = vector.extract_strided_slice %0 {offsets = [0, 1, 0], sizes = [1, 1, 256], strides = [1, 1, 1]} : vector<1x4x256xf32> to vector<1x1x256xf32>
    %209 = vector.shape_cast %208 : vector<1x1x256xf32> to vector<1x256xf32>
    %cst_87 = arith.constant 0.000000e+00 : f32
    %210 = vector.broadcast %cst_87 : f32 to vector<1x17xf32>
    %211 = vector.extract_strided_slice %209 {offsets = [0, 0], sizes = [1, 239], strides = [1, 1]} : vector<1x256xf32> to vector<1x239xf32>
    %212 = tpu.concatenate %210, %211 in 1 : vector<1x17xf32>, vector<1x239xf32> -> vector<1x256xf32>
    %cst_88 = arith.constant 0.000000e+00 : f32
    %213 = vector.broadcast %cst_88 : f32 to vector<1x256xf32>
    %214 = arith.select %19, %212, %213 : vector<1x256xi1>, vector<1x256xf32>
    %c0_89 = arith.constant 0 : index
    %c9 = arith.constant 9 : index
    %215 = memref.load %arg2[%c0_89, %c9] : memref<4x36xf32, #tpu.memory_space<smem>>
    %216 = vector.broadcast %215 : f32 to vector<1x256xf32>
    %217 = arith.mulf %216, %214 : vector<1x256xf32>
    %218 = arith.addf %195, %217 : vector<1x256xf32>
    %c1_90 = arith.constant 1 : index
    %c9_91 = arith.constant 9 : index
    %219 = memref.load %arg2[%c1_90, %c9_91] : memref<4x36xf32, #tpu.memory_space<smem>>
    %220 = vector.broadcast %219 : f32 to vector<1x256xf32>
    %221 = arith.mulf %220, %214 : vector<1x256xf32>
    %222 = arith.addf %199, %221 : vector<1x256xf32>
    %c2_92 = arith.constant 2 : index
    %c9_93 = arith.constant 9 : index
    %223 = memref.load %arg2[%c2_92, %c9_93] : memref<4x36xf32, #tpu.memory_space<smem>>
    %224 = vector.broadcast %223 : f32 to vector<1x256xf32>
    %225 = arith.mulf %224, %214 : vector<1x256xf32>
    %226 = arith.addf %203, %225 : vector<1x256xf32>
    %c3_94 = arith.constant 3 : index
    %c9_95 = arith.constant 9 : index
    %227 = memref.load %arg2[%c3_94, %c9_95] : memref<4x36xf32, #tpu.memory_space<smem>>
    %228 = vector.broadcast %227 : f32 to vector<1x256xf32>
    %229 = arith.mulf %228, %214 : vector<1x256xf32>
    %230 = arith.addf %207, %229 : vector<1x256xf32>
    %cst_96 = arith.constant 0.000000e+00 : f32
    %231 = vector.broadcast %cst_96 : f32 to vector<1x16xf32>
    %232 = vector.extract_strided_slice %209 {offsets = [0, 0], sizes = [1, 240], strides = [1, 1]} : vector<1x256xf32> to vector<1x240xf32>
    %233 = tpu.concatenate %231, %232 in 1 : vector<1x16xf32>, vector<1x240xf32> -> vector<1x256xf32>
    %c0_97 = arith.constant 0 : index
    %c10 = arith.constant 10 : index
    %234 = memref.load %arg2[%c0_97, %c10] : memref<4x36xf32, #tpu.memory_space<smem>>
    %235 = vector.broadcast %234 : f32 to vector<1x256xf32>
    %236 = arith.mulf %235, %233 : vector<1x256xf32>
    %237 = arith.addf %218, %236 : vector<1x256xf32>
    %c1_98 = arith.constant 1 : index
    %c10_99 = arith.constant 10 : index
    %238 = memref.load %arg2[%c1_98, %c10_99] : memref<4x36xf32, #tpu.memory_space<smem>>
    %239 = vector.broadcast %238 : f32 to vector<1x256xf32>
    %240 = arith.mulf %239, %233 : vector<1x256xf32>
    %241 = arith.addf %222, %240 : vector<1x256xf32>
    %c2_100 = arith.constant 2 : index
    %c10_101 = arith.constant 10 : index
    %242 = memref.load %arg2[%c2_100, %c10_101] : memref<4x36xf32, #tpu.memory_space<smem>>
    %243 = vector.broadcast %242 : f32 to vector<1x256xf32>
    %244 = arith.mulf %243, %233 : vector<1x256xf32>
    %245 = arith.addf %226, %244 : vector<1x256xf32>
    %c3_102 = arith.constant 3 : index
    %c10_103 = arith.constant 10 : index
    %246 = memref.load %arg2[%c3_102, %c10_103] : memref<4x36xf32, #tpu.memory_space<smem>>
    %247 = vector.broadcast %246 : f32 to vector<1x256xf32>
    %248 = arith.mulf %247, %233 : vector<1x256xf32>
    %249 = arith.addf %230, %248 : vector<1x256xf32>
    %cst_104 = arith.constant 0.000000e+00 : f32
    %250 = vector.broadcast %cst_104 : f32 to vector<1x15xf32>
    %251 = vector.extract_strided_slice %209 {offsets = [0, 0], sizes = [1, 241], strides = [1, 1]} : vector<1x256xf32> to vector<1x241xf32>
    %252 = tpu.concatenate %250, %251 in 1 : vector<1x15xf32>, vector<1x241xf32> -> vector<1x256xf32>
    %cst_105 = arith.constant 0.000000e+00 : f32
    %253 = vector.broadcast %cst_105 : f32 to vector<1x256xf32>
    %254 = arith.select %21, %252, %253 : vector<1x256xi1>, vector<1x256xf32>
    %c0_106 = arith.constant 0 : index
    %c11 = arith.constant 11 : index
    %255 = memref.load %arg2[%c0_106, %c11] : memref<4x36xf32, #tpu.memory_space<smem>>
    %256 = vector.broadcast %255 : f32 to vector<1x256xf32>
    %257 = arith.mulf %256, %254 : vector<1x256xf32>
    %258 = arith.addf %237, %257 : vector<1x256xf32>
    %c1_107 = arith.constant 1 : index
    %c11_108 = arith.constant 11 : index
    %259 = memref.load %arg2[%c1_107, %c11_108] : memref<4x36xf32, #tpu.memory_space<smem>>
    %260 = vector.broadcast %259 : f32 to vector<1x256xf32>
    %261 = arith.mulf %260, %254 : vector<1x256xf32>
    %262 = arith.addf %241, %261 : vector<1x256xf32>
    %c2_109 = arith.constant 2 : index
    %c11_110 = arith.constant 11 : index
    %263 = memref.load %arg2[%c2_109, %c11_110] : memref<4x36xf32, #tpu.memory_space<smem>>
    %264 = vector.broadcast %263 : f32 to vector<1x256xf32>
    %265 = arith.mulf %264, %254 : vector<1x256xf32>
    %266 = arith.addf %245, %265 : vector<1x256xf32>
    %c3_111 = arith.constant 3 : index
    %c11_112 = arith.constant 11 : index
    %267 = memref.load %arg2[%c3_111, %c11_112] : memref<4x36xf32, #tpu.memory_space<smem>>
    %268 = vector.broadcast %267 : f32 to vector<1x256xf32>
    %269 = arith.mulf %268, %254 : vector<1x256xf32>
    %270 = arith.addf %249, %269 : vector<1x256xf32>
    %cst_113 = arith.constant 0.000000e+00 : f32
    %271 = vector.broadcast %cst_113 : f32 to vector<1x1xf32>
    %272 = vector.extract_strided_slice %209 {offsets = [0, 0], sizes = [1, 255], strides = [1, 1]} : vector<1x256xf32> to vector<1x255xf32>
    %273 = tpu.concatenate %271, %272 in 1 : vector<1x1xf32>, vector<1x255xf32> -> vector<1x256xf32>
    %cst_114 = arith.constant 0.000000e+00 : f32
    %274 = vector.broadcast %cst_114 : f32 to vector<1x256xf32>
    %275 = arith.select %19, %273, %274 : vector<1x256xi1>, vector<1x256xf32>
    %c0_115 = arith.constant 0 : index
    %c12 = arith.constant 12 : index
    %276 = memref.load %arg2[%c0_115, %c12] : memref<4x36xf32, #tpu.memory_space<smem>>
    %277 = vector.broadcast %276 : f32 to vector<1x256xf32>
    %278 = arith.mulf %277, %275 : vector<1x256xf32>
    %279 = arith.addf %258, %278 : vector<1x256xf32>
    %c1_116 = arith.constant 1 : index
    %c12_117 = arith.constant 12 : index
    %280 = memref.load %arg2[%c1_116, %c12_117] : memref<4x36xf32, #tpu.memory_space<smem>>
    %281 = vector.broadcast %280 : f32 to vector<1x256xf32>
    %282 = arith.mulf %281, %275 : vector<1x256xf32>
    %283 = arith.addf %262, %282 : vector<1x256xf32>
    %c2_118 = arith.constant 2 : index
    %c12_119 = arith.constant 12 : index
    %284 = memref.load %arg2[%c2_118, %c12_119] : memref<4x36xf32, #tpu.memory_space<smem>>
    %285 = vector.broadcast %284 : f32 to vector<1x256xf32>
    %286 = arith.mulf %285, %275 : vector<1x256xf32>
    %287 = arith.addf %266, %286 : vector<1x256xf32>
    %c3_120 = arith.constant 3 : index
    %c12_121 = arith.constant 12 : index
    %288 = memref.load %arg2[%c3_120, %c12_121] : memref<4x36xf32, #tpu.memory_space<smem>>
    %289 = vector.broadcast %288 : f32 to vector<1x256xf32>
    %290 = arith.mulf %289, %275 : vector<1x256xf32>
    %291 = arith.addf %270, %290 : vector<1x256xf32>
    %c0_122 = arith.constant 0 : index
    %c13 = arith.constant 13 : index
    %292 = memref.load %arg2[%c0_122, %c13] : memref<4x36xf32, #tpu.memory_space<smem>>
    %293 = vector.broadcast %292 : f32 to vector<1x256xf32>
    %294 = arith.mulf %293, %209 : vector<1x256xf32>
    %295 = arith.addf %279, %294 : vector<1x256xf32>
    %c1_123 = arith.constant 1 : index
    %c13_124 = arith.constant 13 : index
    %296 = memref.load %arg2[%c1_123, %c13_124] : memref<4x36xf32, #tpu.memory_space<smem>>
    %297 = vector.broadcast %296 : f32 to vector<1x256xf32>
    %298 = arith.mulf %297, %209 : vector<1x256xf32>
    %299 = arith.addf %283, %298 : vector<1x256xf32>
    %c2_125 = arith.constant 2 : index
    %c13_126 = arith.constant 13 : index
    %300 = memref.load %arg2[%c2_125, %c13_126] : memref<4x36xf32, #tpu.memory_space<smem>>
    %301 = vector.broadcast %300 : f32 to vector<1x256xf32>
    %302 = arith.mulf %301, %209 : vector<1x256xf32>
    %303 = arith.addf %287, %302 : vector<1x256xf32>
    %c3_127 = arith.constant 3 : index
    %c13_128 = arith.constant 13 : index
    %304 = memref.load %arg2[%c3_127, %c13_128] : memref<4x36xf32, #tpu.memory_space<smem>>
    %305 = vector.broadcast %304 : f32 to vector<1x256xf32>
    %306 = arith.mulf %305, %209 : vector<1x256xf32>
    %307 = arith.addf %291, %306 : vector<1x256xf32>
    %308 = vector.extract_strided_slice %209 {offsets = [0, 1], sizes = [1, 255], strides = [1, 1]} : vector<1x256xf32> to vector<1x255xf32>
    %cst_129 = arith.constant 0.000000e+00 : f32
    %309 = vector.broadcast %cst_129 : f32 to vector<1x1xf32>
    %310 = tpu.concatenate %308, %309 in 1 : vector<1x255xf32>, vector<1x1xf32> -> vector<1x256xf32>
    %cst_130 = arith.constant 0.000000e+00 : f32
    %311 = vector.broadcast %cst_130 : f32 to vector<1x256xf32>
    %312 = arith.select %21, %310, %311 : vector<1x256xi1>, vector<1x256xf32>
    %c0_131 = arith.constant 0 : index
    %c14 = arith.constant 14 : index
    %313 = memref.load %arg2[%c0_131, %c14] : memref<4x36xf32, #tpu.memory_space<smem>>
    %314 = vector.broadcast %313 : f32 to vector<1x256xf32>
    %315 = arith.mulf %314, %312 : vector<1x256xf32>
    %316 = arith.addf %295, %315 : vector<1x256xf32>
    %c1_132 = arith.constant 1 : index
    %c14_133 = arith.constant 14 : index
    %317 = memref.load %arg2[%c1_132, %c14_133] : memref<4x36xf32, #tpu.memory_space<smem>>
    %318 = vector.broadcast %317 : f32 to vector<1x256xf32>
    %319 = arith.mulf %318, %312 : vector<1x256xf32>
    %320 = arith.addf %299, %319 : vector<1x256xf32>
    %c2_134 = arith.constant 2 : index
    %c14_135 = arith.constant 14 : index
    %321 = memref.load %arg2[%c2_134, %c14_135] : memref<4x36xf32, #tpu.memory_space<smem>>
    %322 = vector.broadcast %321 : f32 to vector<1x256xf32>
    %323 = arith.mulf %322, %312 : vector<1x256xf32>
    %324 = arith.addf %303, %323 : vector<1x256xf32>
    %c3_136 = arith.constant 3 : index
    %c14_137 = arith.constant 14 : index
    %325 = memref.load %arg2[%c3_136, %c14_137] : memref<4x36xf32, #tpu.memory_space<smem>>
    %326 = vector.broadcast %325 : f32 to vector<1x256xf32>
    %327 = arith.mulf %326, %312 : vector<1x256xf32>
    %328 = arith.addf %307, %327 : vector<1x256xf32>
    %329 = vector.extract_strided_slice %209 {offsets = [0, 15], sizes = [1, 241], strides = [1, 1]} : vector<1x256xf32> to vector<1x241xf32>
    %cst_138 = arith.constant 0.000000e+00 : f32
    %330 = vector.broadcast %cst_138 : f32 to vector<1x15xf32>
    %331 = tpu.concatenate %329, %330 in 1 : vector<1x241xf32>, vector<1x15xf32> -> vector<1x256xf32>
    %cst_139 = arith.constant 0.000000e+00 : f32
    %332 = vector.broadcast %cst_139 : f32 to vector<1x256xf32>
    %333 = arith.select %19, %331, %332 : vector<1x256xi1>, vector<1x256xf32>
    %c0_140 = arith.constant 0 : index
    %c15 = arith.constant 15 : index
    %334 = memref.load %arg2[%c0_140, %c15] : memref<4x36xf32, #tpu.memory_space<smem>>
    %335 = vector.broadcast %334 : f32 to vector<1x256xf32>
    %336 = arith.mulf %335, %333 : vector<1x256xf32>
    %337 = arith.addf %316, %336 : vector<1x256xf32>
    %c1_141 = arith.constant 1 : index
    %c15_142 = arith.constant 15 : index
    %338 = memref.load %arg2[%c1_141, %c15_142] : memref<4x36xf32, #tpu.memory_space<smem>>
    %339 = vector.broadcast %338 : f32 to vector<1x256xf32>
    %340 = arith.mulf %339, %333 : vector<1x256xf32>
    %341 = arith.addf %320, %340 : vector<1x256xf32>
    %c2_143 = arith.constant 2 : index
    %c15_144 = arith.constant 15 : index
    %342 = memref.load %arg2[%c2_143, %c15_144] : memref<4x36xf32, #tpu.memory_space<smem>>
    %343 = vector.broadcast %342 : f32 to vector<1x256xf32>
    %344 = arith.mulf %343, %333 : vector<1x256xf32>
    %345 = arith.addf %324, %344 : vector<1x256xf32>
    %c3_145 = arith.constant 3 : index
    %c15_146 = arith.constant 15 : index
    %346 = memref.load %arg2[%c3_145, %c15_146] : memref<4x36xf32, #tpu.memory_space<smem>>
    %347 = vector.broadcast %346 : f32 to vector<1x256xf32>
    %348 = arith.mulf %347, %333 : vector<1x256xf32>
    %349 = arith.addf %328, %348 : vector<1x256xf32>
    %350 = vector.extract_strided_slice %209 {offsets = [0, 16], sizes = [1, 240], strides = [1, 1]} : vector<1x256xf32> to vector<1x240xf32>
    %cst_147 = arith.constant 0.000000e+00 : f32
    %351 = vector.broadcast %cst_147 : f32 to vector<1x16xf32>
    %352 = tpu.concatenate %350, %351 in 1 : vector<1x240xf32>, vector<1x16xf32> -> vector<1x256xf32>
    %c0_148 = arith.constant 0 : index
    %c16 = arith.constant 16 : index
    %353 = memref.load %arg2[%c0_148, %c16] : memref<4x36xf32, #tpu.memory_space<smem>>
    %354 = vector.broadcast %353 : f32 to vector<1x256xf32>
    %355 = arith.mulf %354, %352 : vector<1x256xf32>
    %356 = arith.addf %337, %355 : vector<1x256xf32>
    %c1_149 = arith.constant 1 : index
    %c16_150 = arith.constant 16 : index
    %357 = memref.load %arg2[%c1_149, %c16_150] : memref<4x36xf32, #tpu.memory_space<smem>>
    %358 = vector.broadcast %357 : f32 to vector<1x256xf32>
    %359 = arith.mulf %358, %352 : vector<1x256xf32>
    %360 = arith.addf %341, %359 : vector<1x256xf32>
    %c2_151 = arith.constant 2 : index
    %c16_152 = arith.constant 16 : index
    %361 = memref.load %arg2[%c2_151, %c16_152] : memref<4x36xf32, #tpu.memory_space<smem>>
    %362 = vector.broadcast %361 : f32 to vector<1x256xf32>
    %363 = arith.mulf %362, %352 : vector<1x256xf32>
    %364 = arith.addf %345, %363 : vector<1x256xf32>
    %c3_153 = arith.constant 3 : index
    %c16_154 = arith.constant 16 : index
    %365 = memref.load %arg2[%c3_153, %c16_154] : memref<4x36xf32, #tpu.memory_space<smem>>
    %366 = vector.broadcast %365 : f32 to vector<1x256xf32>
    %367 = arith.mulf %366, %352 : vector<1x256xf32>
    %368 = arith.addf %349, %367 : vector<1x256xf32>
    %369 = vector.extract_strided_slice %209 {offsets = [0, 17], sizes = [1, 239], strides = [1, 1]} : vector<1x256xf32> to vector<1x239xf32>
    %cst_155 = arith.constant 0.000000e+00 : f32
    %370 = vector.broadcast %cst_155 : f32 to vector<1x17xf32>
    %371 = tpu.concatenate %369, %370 in 1 : vector<1x239xf32>, vector<1x17xf32> -> vector<1x256xf32>
    %cst_156 = arith.constant 0.000000e+00 : f32
    %372 = vector.broadcast %cst_156 : f32 to vector<1x256xf32>
    %373 = arith.select %21, %371, %372 : vector<1x256xi1>, vector<1x256xf32>
    %c0_157 = arith.constant 0 : index
    %c17 = arith.constant 17 : index
    %374 = memref.load %arg2[%c0_157, %c17] : memref<4x36xf32, #tpu.memory_space<smem>>
    %375 = vector.broadcast %374 : f32 to vector<1x256xf32>
    %376 = arith.mulf %375, %373 : vector<1x256xf32>
    %377 = arith.addf %356, %376 : vector<1x256xf32>
    %c1_158 = arith.constant 1 : index
    %c17_159 = arith.constant 17 : index
    %378 = memref.load %arg2[%c1_158, %c17_159] : memref<4x36xf32, #tpu.memory_space<smem>>
    %379 = vector.broadcast %378 : f32 to vector<1x256xf32>
    %380 = arith.mulf %379, %373 : vector<1x256xf32>
    %381 = arith.addf %360, %380 : vector<1x256xf32>
    %c2_160 = arith.constant 2 : index
    %c17_161 = arith.constant 17 : index
    %382 = memref.load %arg2[%c2_160, %c17_161] : memref<4x36xf32, #tpu.memory_space<smem>>
    %383 = vector.broadcast %382 : f32 to vector<1x256xf32>
    %384 = arith.mulf %383, %373 : vector<1x256xf32>
    %385 = arith.addf %364, %384 : vector<1x256xf32>
    %c3_162 = arith.constant 3 : index
    %c17_163 = arith.constant 17 : index
    %386 = memref.load %arg2[%c3_162, %c17_163] : memref<4x36xf32, #tpu.memory_space<smem>>
    %387 = vector.broadcast %386 : f32 to vector<1x256xf32>
    %388 = arith.mulf %387, %373 : vector<1x256xf32>
    %389 = arith.addf %368, %388 : vector<1x256xf32>
    %390 = vector.extract_strided_slice %0 {offsets = [0, 2, 0], sizes = [1, 1, 256], strides = [1, 1, 1]} : vector<1x4x256xf32> to vector<1x1x256xf32>
    %391 = vector.shape_cast %390 : vector<1x1x256xf32> to vector<1x256xf32>
    %cst_164 = arith.constant 0.000000e+00 : f32
    %392 = vector.broadcast %cst_164 : f32 to vector<1x17xf32>
    %393 = vector.extract_strided_slice %391 {offsets = [0, 0], sizes = [1, 239], strides = [1, 1]} : vector<1x256xf32> to vector<1x239xf32>
    %394 = tpu.concatenate %392, %393 in 1 : vector<1x17xf32>, vector<1x239xf32> -> vector<1x256xf32>
    %cst_165 = arith.constant 0.000000e+00 : f32
    %395 = vector.broadcast %cst_165 : f32 to vector<1x256xf32>
    %396 = arith.select %19, %394, %395 : vector<1x256xi1>, vector<1x256xf32>
    %c0_166 = arith.constant 0 : index
    %c18 = arith.constant 18 : index
    %397 = memref.load %arg2[%c0_166, %c18] : memref<4x36xf32, #tpu.memory_space<smem>>
    %398 = vector.broadcast %397 : f32 to vector<1x256xf32>
    %399 = arith.mulf %398, %396 : vector<1x256xf32>
    %400 = arith.addf %377, %399 : vector<1x256xf32>
    %c1_167 = arith.constant 1 : index
    %c18_168 = arith.constant 18 : index
    %401 = memref.load %arg2[%c1_167, %c18_168] : memref<4x36xf32, #tpu.memory_space<smem>>
    %402 = vector.broadcast %401 : f32 to vector<1x256xf32>
    %403 = arith.mulf %402, %396 : vector<1x256xf32>
    %404 = arith.addf %381, %403 : vector<1x256xf32>
    %c2_169 = arith.constant 2 : index
    %c18_170 = arith.constant 18 : index
    %405 = memref.load %arg2[%c2_169, %c18_170] : memref<4x36xf32, #tpu.memory_space<smem>>
    %406 = vector.broadcast %405 : f32 to vector<1x256xf32>
    %407 = arith.mulf %406, %396 : vector<1x256xf32>
    %408 = arith.addf %385, %407 : vector<1x256xf32>
    %c3_171 = arith.constant 3 : index
    %c18_172 = arith.constant 18 : index
    %409 = memref.load %arg2[%c3_171, %c18_172] : memref<4x36xf32, #tpu.memory_space<smem>>
    %410 = vector.broadcast %409 : f32 to vector<1x256xf32>
    %411 = arith.mulf %410, %396 : vector<1x256xf32>
    %412 = arith.addf %389, %411 : vector<1x256xf32>
    %cst_173 = arith.constant 0.000000e+00 : f32
    %413 = vector.broadcast %cst_173 : f32 to vector<1x16xf32>
    %414 = vector.extract_strided_slice %391 {offsets = [0, 0], sizes = [1, 240], strides = [1, 1]} : vector<1x256xf32> to vector<1x240xf32>
    %415 = tpu.concatenate %413, %414 in 1 : vector<1x16xf32>, vector<1x240xf32> -> vector<1x256xf32>
    %c0_174 = arith.constant 0 : index
    %c19 = arith.constant 19 : index
    %416 = memref.load %arg2[%c0_174, %c19] : memref<4x36xf32, #tpu.memory_space<smem>>
    %417 = vector.broadcast %416 : f32 to vector<1x256xf32>
    %418 = arith.mulf %417, %415 : vector<1x256xf32>
    %419 = arith.addf %400, %418 : vector<1x256xf32>
    %c1_175 = arith.constant 1 : index
    %c19_176 = arith.constant 19 : index
    %420 = memref.load %arg2[%c1_175, %c19_176] : memref<4x36xf32, #tpu.memory_space<smem>>
    %421 = vector.broadcast %420 : f32 to vector<1x256xf32>
    %422 = arith.mulf %421, %415 : vector<1x256xf32>
    %423 = arith.addf %404, %422 : vector<1x256xf32>
    %c2_177 = arith.constant 2 : index
    %c19_178 = arith.constant 19 : index
    %424 = memref.load %arg2[%c2_177, %c19_178] : memref<4x36xf32, #tpu.memory_space<smem>>
    %425 = vector.broadcast %424 : f32 to vector<1x256xf32>
    %426 = arith.mulf %425, %415 : vector<1x256xf32>
    %427 = arith.addf %408, %426 : vector<1x256xf32>
    %c3_179 = arith.constant 3 : index
    %c19_180 = arith.constant 19 : index
    %428 = memref.load %arg2[%c3_179, %c19_180] : memref<4x36xf32, #tpu.memory_space<smem>>
    %429 = vector.broadcast %428 : f32 to vector<1x256xf32>
    %430 = arith.mulf %429, %415 : vector<1x256xf32>
    %431 = arith.addf %412, %430 : vector<1x256xf32>
    %cst_181 = arith.constant 0.000000e+00 : f32
    %432 = vector.broadcast %cst_181 : f32 to vector<1x15xf32>
    %433 = vector.extract_strided_slice %391 {offsets = [0, 0], sizes = [1, 241], strides = [1, 1]} : vector<1x256xf32> to vector<1x241xf32>
    %434 = tpu.concatenate %432, %433 in 1 : vector<1x15xf32>, vector<1x241xf32> -> vector<1x256xf32>
    %cst_182 = arith.constant 0.000000e+00 : f32
    %435 = vector.broadcast %cst_182 : f32 to vector<1x256xf32>
    %436 = arith.select %21, %434, %435 : vector<1x256xi1>, vector<1x256xf32>
    %c0_183 = arith.constant 0 : index
    %c20 = arith.constant 20 : index
    %437 = memref.load %arg2[%c0_183, %c20] : memref<4x36xf32, #tpu.memory_space<smem>>
    %438 = vector.broadcast %437 : f32 to vector<1x256xf32>
    %439 = arith.mulf %438, %436 : vector<1x256xf32>
    %440 = arith.addf %419, %439 : vector<1x256xf32>
    %c1_184 = arith.constant 1 : index
    %c20_185 = arith.constant 20 : index
    %441 = memref.load %arg2[%c1_184, %c20_185] : memref<4x36xf32, #tpu.memory_space<smem>>
    %442 = vector.broadcast %441 : f32 to vector<1x256xf32>
    %443 = arith.mulf %442, %436 : vector<1x256xf32>
    %444 = arith.addf %423, %443 : vector<1x256xf32>
    %c2_186 = arith.constant 2 : index
    %c20_187 = arith.constant 20 : index
    %445 = memref.load %arg2[%c2_186, %c20_187] : memref<4x36xf32, #tpu.memory_space<smem>>
    %446 = vector.broadcast %445 : f32 to vector<1x256xf32>
    %447 = arith.mulf %446, %436 : vector<1x256xf32>
    %448 = arith.addf %427, %447 : vector<1x256xf32>
    %c3_188 = arith.constant 3 : index
    %c20_189 = arith.constant 20 : index
    %449 = memref.load %arg2[%c3_188, %c20_189] : memref<4x36xf32, #tpu.memory_space<smem>>
    %450 = vector.broadcast %449 : f32 to vector<1x256xf32>
    %451 = arith.mulf %450, %436 : vector<1x256xf32>
    %452 = arith.addf %431, %451 : vector<1x256xf32>
    %cst_190 = arith.constant 0.000000e+00 : f32
    %453 = vector.broadcast %cst_190 : f32 to vector<1x1xf32>
    %454 = vector.extract_strided_slice %391 {offsets = [0, 0], sizes = [1, 255], strides = [1, 1]} : vector<1x256xf32> to vector<1x255xf32>
    %455 = tpu.concatenate %453, %454 in 1 : vector<1x1xf32>, vector<1x255xf32> -> vector<1x256xf32>
    %cst_191 = arith.constant 0.000000e+00 : f32
    %456 = vector.broadcast %cst_191 : f32 to vector<1x256xf32>
    %457 = arith.select %19, %455, %456 : vector<1x256xi1>, vector<1x256xf32>
    %c0_192 = arith.constant 0 : index
    %c21 = arith.constant 21 : index
    %458 = memref.load %arg2[%c0_192, %c21] : memref<4x36xf32, #tpu.memory_space<smem>>
    %459 = vector.broadcast %458 : f32 to vector<1x256xf32>
    %460 = arith.mulf %459, %457 : vector<1x256xf32>
    %461 = arith.addf %440, %460 : vector<1x256xf32>
    %c1_193 = arith.constant 1 : index
    %c21_194 = arith.constant 21 : index
    %462 = memref.load %arg2[%c1_193, %c21_194] : memref<4x36xf32, #tpu.memory_space<smem>>
    %463 = vector.broadcast %462 : f32 to vector<1x256xf32>
    %464 = arith.mulf %463, %457 : vector<1x256xf32>
    %465 = arith.addf %444, %464 : vector<1x256xf32>
    %c2_195 = arith.constant 2 : index
    %c21_196 = arith.constant 21 : index
    %466 = memref.load %arg2[%c2_195, %c21_196] : memref<4x36xf32, #tpu.memory_space<smem>>
    %467 = vector.broadcast %466 : f32 to vector<1x256xf32>
    %468 = arith.mulf %467, %457 : vector<1x256xf32>
    %469 = arith.addf %448, %468 : vector<1x256xf32>
    %c3_197 = arith.constant 3 : index
    %c21_198 = arith.constant 21 : index
    %470 = memref.load %arg2[%c3_197, %c21_198] : memref<4x36xf32, #tpu.memory_space<smem>>
    %471 = vector.broadcast %470 : f32 to vector<1x256xf32>
    %472 = arith.mulf %471, %457 : vector<1x256xf32>
    %473 = arith.addf %452, %472 : vector<1x256xf32>
    %c0_199 = arith.constant 0 : index
    %c22 = arith.constant 22 : index
    %474 = memref.load %arg2[%c0_199, %c22] : memref<4x36xf32, #tpu.memory_space<smem>>
    %475 = vector.broadcast %474 : f32 to vector<1x256xf32>
    %476 = arith.mulf %475, %391 : vector<1x256xf32>
    %477 = arith.addf %461, %476 : vector<1x256xf32>
    %c1_200 = arith.constant 1 : index
    %c22_201 = arith.constant 22 : index
    %478 = memref.load %arg2[%c1_200, %c22_201] : memref<4x36xf32, #tpu.memory_space<smem>>
    %479 = vector.broadcast %478 : f32 to vector<1x256xf32>
    %480 = arith.mulf %479, %391 : vector<1x256xf32>
    %481 = arith.addf %465, %480 : vector<1x256xf32>
    %c2_202 = arith.constant 2 : index
    %c22_203 = arith.constant 22 : index
    %482 = memref.load %arg2[%c2_202, %c22_203] : memref<4x36xf32, #tpu.memory_space<smem>>
    %483 = vector.broadcast %482 : f32 to vector<1x256xf32>
    %484 = arith.mulf %483, %391 : vector<1x256xf32>
    %485 = arith.addf %469, %484 : vector<1x256xf32>
    %c3_204 = arith.constant 3 : index
    %c22_205 = arith.constant 22 : index
    %486 = memref.load %arg2[%c3_204, %c22_205] : memref<4x36xf32, #tpu.memory_space<smem>>
    %487 = vector.broadcast %486 : f32 to vector<1x256xf32>
    %488 = arith.mulf %487, %391 : vector<1x256xf32>
    %489 = arith.addf %473, %488 : vector<1x256xf32>
    %490 = vector.extract_strided_slice %391 {offsets = [0, 1], sizes = [1, 255], strides = [1, 1]} : vector<1x256xf32> to vector<1x255xf32>
    %cst_206 = arith.constant 0.000000e+00 : f32
    %491 = vector.broadcast %cst_206 : f32 to vector<1x1xf32>
    %492 = tpu.concatenate %490, %491 in 1 : vector<1x255xf32>, vector<1x1xf32> -> vector<1x256xf32>
    %cst_207 = arith.constant 0.000000e+00 : f32
    %493 = vector.broadcast %cst_207 : f32 to vector<1x256xf32>
    %494 = arith.select %21, %492, %493 : vector<1x256xi1>, vector<1x256xf32>
    %c0_208 = arith.constant 0 : index
    %c23 = arith.constant 23 : index
    %495 = memref.load %arg2[%c0_208, %c23] : memref<4x36xf32, #tpu.memory_space<smem>>
    %496 = vector.broadcast %495 : f32 to vector<1x256xf32>
    %497 = arith.mulf %496, %494 : vector<1x256xf32>
    %498 = arith.addf %477, %497 : vector<1x256xf32>
    %c1_209 = arith.constant 1 : index
    %c23_210 = arith.constant 23 : index
    %499 = memref.load %arg2[%c1_209, %c23_210] : memref<4x36xf32, #tpu.memory_space<smem>>
    %500 = vector.broadcast %499 : f32 to vector<1x256xf32>
    %501 = arith.mulf %500, %494 : vector<1x256xf32>
    %502 = arith.addf %481, %501 : vector<1x256xf32>
    %c2_211 = arith.constant 2 : index
    %c23_212 = arith.constant 23 : index
    %503 = memref.load %arg2[%c2_211, %c23_212] : memref<4x36xf32, #tpu.memory_space<smem>>
    %504 = vector.broadcast %503 : f32 to vector<1x256xf32>
    %505 = arith.mulf %504, %494 : vector<1x256xf32>
    %506 = arith.addf %485, %505 : vector<1x256xf32>
    %c3_213 = arith.constant 3 : index
    %c23_214 = arith.constant 23 : index
    %507 = memref.load %arg2[%c3_213, %c23_214] : memref<4x36xf32, #tpu.memory_space<smem>>
    %508 = vector.broadcast %507 : f32 to vector<1x256xf32>
    %509 = arith.mulf %508, %494 : vector<1x256xf32>
    %510 = arith.addf %489, %509 : vector<1x256xf32>
    %511 = vector.extract_strided_slice %391 {offsets = [0, 15], sizes = [1, 241], strides = [1, 1]} : vector<1x256xf32> to vector<1x241xf32>
    %cst_215 = arith.constant 0.000000e+00 : f32
    %512 = vector.broadcast %cst_215 : f32 to vector<1x15xf32>
    %513 = tpu.concatenate %511, %512 in 1 : vector<1x241xf32>, vector<1x15xf32> -> vector<1x256xf32>
    %cst_216 = arith.constant 0.000000e+00 : f32
    %514 = vector.broadcast %cst_216 : f32 to vector<1x256xf32>
    %515 = arith.select %19, %513, %514 : vector<1x256xi1>, vector<1x256xf32>
    %c0_217 = arith.constant 0 : index
    %c24 = arith.constant 24 : index
    %516 = memref.load %arg2[%c0_217, %c24] : memref<4x36xf32, #tpu.memory_space<smem>>
    %517 = vector.broadcast %516 : f32 to vector<1x256xf32>
    %518 = arith.mulf %517, %515 : vector<1x256xf32>
    %519 = arith.addf %498, %518 : vector<1x256xf32>
    %c1_218 = arith.constant 1 : index
    %c24_219 = arith.constant 24 : index
    %520 = memref.load %arg2[%c1_218, %c24_219] : memref<4x36xf32, #tpu.memory_space<smem>>
    %521 = vector.broadcast %520 : f32 to vector<1x256xf32>
    %522 = arith.mulf %521, %515 : vector<1x256xf32>
    %523 = arith.addf %502, %522 : vector<1x256xf32>
    %c2_220 = arith.constant 2 : index
    %c24_221 = arith.constant 24 : index
    %524 = memref.load %arg2[%c2_220, %c24_221] : memref<4x36xf32, #tpu.memory_space<smem>>
    %525 = vector.broadcast %524 : f32 to vector<1x256xf32>
    %526 = arith.mulf %525, %515 : vector<1x256xf32>
    %527 = arith.addf %506, %526 : vector<1x256xf32>
    %c3_222 = arith.constant 3 : index
    %c24_223 = arith.constant 24 : index
    %528 = memref.load %arg2[%c3_222, %c24_223] : memref<4x36xf32, #tpu.memory_space<smem>>
    %529 = vector.broadcast %528 : f32 to vector<1x256xf32>
    %530 = arith.mulf %529, %515 : vector<1x256xf32>
    %531 = arith.addf %510, %530 : vector<1x256xf32>
    %532 = vector.extract_strided_slice %391 {offsets = [0, 16], sizes = [1, 240], strides = [1, 1]} : vector<1x256xf32> to vector<1x240xf32>
    %cst_224 = arith.constant 0.000000e+00 : f32
    %533 = vector.broadcast %cst_224 : f32 to vector<1x16xf32>
    %534 = tpu.concatenate %532, %533 in 1 : vector<1x240xf32>, vector<1x16xf32> -> vector<1x256xf32>
    %c0_225 = arith.constant 0 : index
    %c25 = arith.constant 25 : index
    %535 = memref.load %arg2[%c0_225, %c25] : memref<4x36xf32, #tpu.memory_space<smem>>
    %536 = vector.broadcast %535 : f32 to vector<1x256xf32>
    %537 = arith.mulf %536, %534 : vector<1x256xf32>
    %538 = arith.addf %519, %537 : vector<1x256xf32>
    %c1_226 = arith.constant 1 : index
    %c25_227 = arith.constant 25 : index
    %539 = memref.load %arg2[%c1_226, %c25_227] : memref<4x36xf32, #tpu.memory_space<smem>>
    %540 = vector.broadcast %539 : f32 to vector<1x256xf32>
    %541 = arith.mulf %540, %534 : vector<1x256xf32>
    %542 = arith.addf %523, %541 : vector<1x256xf32>
    %c2_228 = arith.constant 2 : index
    %c25_229 = arith.constant 25 : index
    %543 = memref.load %arg2[%c2_228, %c25_229] : memref<4x36xf32, #tpu.memory_space<smem>>
    %544 = vector.broadcast %543 : f32 to vector<1x256xf32>
    %545 = arith.mulf %544, %534 : vector<1x256xf32>
    %546 = arith.addf %527, %545 : vector<1x256xf32>
    %c3_230 = arith.constant 3 : index
    %c25_231 = arith.constant 25 : index
    %547 = memref.load %arg2[%c3_230, %c25_231] : memref<4x36xf32, #tpu.memory_space<smem>>
    %548 = vector.broadcast %547 : f32 to vector<1x256xf32>
    %549 = arith.mulf %548, %534 : vector<1x256xf32>
    %550 = arith.addf %531, %549 : vector<1x256xf32>
    %551 = vector.extract_strided_slice %391 {offsets = [0, 17], sizes = [1, 239], strides = [1, 1]} : vector<1x256xf32> to vector<1x239xf32>
    %cst_232 = arith.constant 0.000000e+00 : f32
    %552 = vector.broadcast %cst_232 : f32 to vector<1x17xf32>
    %553 = tpu.concatenate %551, %552 in 1 : vector<1x239xf32>, vector<1x17xf32> -> vector<1x256xf32>
    %cst_233 = arith.constant 0.000000e+00 : f32
    %554 = vector.broadcast %cst_233 : f32 to vector<1x256xf32>
    %555 = arith.select %21, %553, %554 : vector<1x256xi1>, vector<1x256xf32>
    %c0_234 = arith.constant 0 : index
    %c26 = arith.constant 26 : index
    %556 = memref.load %arg2[%c0_234, %c26] : memref<4x36xf32, #tpu.memory_space<smem>>
    %557 = vector.broadcast %556 : f32 to vector<1x256xf32>
    %558 = arith.mulf %557, %555 : vector<1x256xf32>
    %559 = arith.addf %538, %558 : vector<1x256xf32>
    %c1_235 = arith.constant 1 : index
    %c26_236 = arith.constant 26 : index
    %560 = memref.load %arg2[%c1_235, %c26_236] : memref<4x36xf32, #tpu.memory_space<smem>>
    %561 = vector.broadcast %560 : f32 to vector<1x256xf32>
    %562 = arith.mulf %561, %555 : vector<1x256xf32>
    %563 = arith.addf %542, %562 : vector<1x256xf32>
    %c2_237 = arith.constant 2 : index
    %c26_238 = arith.constant 26 : index
    %564 = memref.load %arg2[%c2_237, %c26_238] : memref<4x36xf32, #tpu.memory_space<smem>>
    %565 = vector.broadcast %564 : f32 to vector<1x256xf32>
    %566 = arith.mulf %565, %555 : vector<1x256xf32>
    %567 = arith.addf %546, %566 : vector<1x256xf32>
    %c3_239 = arith.constant 3 : index
    %c26_240 = arith.constant 26 : index
    %568 = memref.load %arg2[%c3_239, %c26_240] : memref<4x36xf32, #tpu.memory_space<smem>>
    %569 = vector.broadcast %568 : f32 to vector<1x256xf32>
    %570 = arith.mulf %569, %555 : vector<1x256xf32>
    %571 = arith.addf %550, %570 : vector<1x256xf32>
    %572 = vector.extract_strided_slice %0 {offsets = [0, 3, 0], sizes = [1, 1, 256], strides = [1, 1, 1]} : vector<1x4x256xf32> to vector<1x1x256xf32>
    %573 = vector.shape_cast %572 : vector<1x1x256xf32> to vector<1x256xf32>
    %cst_241 = arith.constant 0.000000e+00 : f32
    %574 = vector.broadcast %cst_241 : f32 to vector<1x17xf32>
    %575 = vector.extract_strided_slice %573 {offsets = [0, 0], sizes = [1, 239], strides = [1, 1]} : vector<1x256xf32> to vector<1x239xf32>
    %576 = tpu.concatenate %574, %575 in 1 : vector<1x17xf32>, vector<1x239xf32> -> vector<1x256xf32>
    %cst_242 = arith.constant 0.000000e+00 : f32
    %577 = vector.broadcast %cst_242 : f32 to vector<1x256xf32>
    %578 = arith.select %19, %576, %577 : vector<1x256xi1>, vector<1x256xf32>
    %c0_243 = arith.constant 0 : index
    %c27 = arith.constant 27 : index
    %579 = memref.load %arg2[%c0_243, %c27] : memref<4x36xf32, #tpu.memory_space<smem>>
    %580 = vector.broadcast %579 : f32 to vector<1x256xf32>
    %581 = arith.mulf %580, %578 : vector<1x256xf32>
    %582 = arith.addf %559, %581 : vector<1x256xf32>
    %c1_244 = arith.constant 1 : index
    %c27_245 = arith.constant 27 : index
    %583 = memref.load %arg2[%c1_244, %c27_245] : memref<4x36xf32, #tpu.memory_space<smem>>
    %584 = vector.broadcast %583 : f32 to vector<1x256xf32>
    %585 = arith.mulf %584, %578 : vector<1x256xf32>
    %586 = arith.addf %563, %585 : vector<1x256xf32>
    %c2_246 = arith.constant 2 : index
    %c27_247 = arith.constant 27 : index
    %587 = memref.load %arg2[%c2_246, %c27_247] : memref<4x36xf32, #tpu.memory_space<smem>>
    %588 = vector.broadcast %587 : f32 to vector<1x256xf32>
    %589 = arith.mulf %588, %578 : vector<1x256xf32>
    %590 = arith.addf %567, %589 : vector<1x256xf32>
    %c3_248 = arith.constant 3 : index
    %c27_249 = arith.constant 27 : index
    %591 = memref.load %arg2[%c3_248, %c27_249] : memref<4x36xf32, #tpu.memory_space<smem>>
    %592 = vector.broadcast %591 : f32 to vector<1x256xf32>
    %593 = arith.mulf %592, %578 : vector<1x256xf32>
    %594 = arith.addf %571, %593 : vector<1x256xf32>
    %cst_250 = arith.constant 0.000000e+00 : f32
    %595 = vector.broadcast %cst_250 : f32 to vector<1x16xf32>
    %596 = vector.extract_strided_slice %573 {offsets = [0, 0], sizes = [1, 240], strides = [1, 1]} : vector<1x256xf32> to vector<1x240xf32>
    %597 = tpu.concatenate %595, %596 in 1 : vector<1x16xf32>, vector<1x240xf32> -> vector<1x256xf32>
    %c0_251 = arith.constant 0 : index
    %c28 = arith.constant 28 : index
    %598 = memref.load %arg2[%c0_251, %c28] : memref<4x36xf32, #tpu.memory_space<smem>>
    %599 = vector.broadcast %598 : f32 to vector<1x256xf32>
    %600 = arith.mulf %599, %597 : vector<1x256xf32>
    %601 = arith.addf %582, %600 : vector<1x256xf32>
    %c1_252 = arith.constant 1 : index
    %c28_253 = arith.constant 28 : index
    %602 = memref.load %arg2[%c1_252, %c28_253] : memref<4x36xf32, #tpu.memory_space<smem>>
    %603 = vector.broadcast %602 : f32 to vector<1x256xf32>
    %604 = arith.mulf %603, %597 : vector<1x256xf32>
    %605 = arith.addf %586, %604 : vector<1x256xf32>
    %c2_254 = arith.constant 2 : index
    %c28_255 = arith.constant 28 : index
    %606 = memref.load %arg2[%c2_254, %c28_255] : memref<4x36xf32, #tpu.memory_space<smem>>
    %607 = vector.broadcast %606 : f32 to vector<1x256xf32>
    %608 = arith.mulf %607, %597 : vector<1x256xf32>
    %609 = arith.addf %590, %608 : vector<1x256xf32>
    %c3_256 = arith.constant 3 : index
    %c28_257 = arith.constant 28 : index
    %610 = memref.load %arg2[%c3_256, %c28_257] : memref<4x36xf32, #tpu.memory_space<smem>>
    %611 = vector.broadcast %610 : f32 to vector<1x256xf32>
    %612 = arith.mulf %611, %597 : vector<1x256xf32>
    %613 = arith.addf %594, %612 : vector<1x256xf32>
    %cst_258 = arith.constant 0.000000e+00 : f32
    %614 = vector.broadcast %cst_258 : f32 to vector<1x15xf32>
    %615 = vector.extract_strided_slice %573 {offsets = [0, 0], sizes = [1, 241], strides = [1, 1]} : vector<1x256xf32> to vector<1x241xf32>
    %616 = tpu.concatenate %614, %615 in 1 : vector<1x15xf32>, vector<1x241xf32> -> vector<1x256xf32>
    %cst_259 = arith.constant 0.000000e+00 : f32
    %617 = vector.broadcast %cst_259 : f32 to vector<1x256xf32>
    %618 = arith.select %21, %616, %617 : vector<1x256xi1>, vector<1x256xf32>
    %c0_260 = arith.constant 0 : index
    %c29 = arith.constant 29 : index
    %619 = memref.load %arg2[%c0_260, %c29] : memref<4x36xf32, #tpu.memory_space<smem>>
    %620 = vector.broadcast %619 : f32 to vector<1x256xf32>
    %621 = arith.mulf %620, %618 : vector<1x256xf32>
    %622 = arith.addf %601, %621 : vector<1x256xf32>
    %c1_261 = arith.constant 1 : index
    %c29_262 = arith.constant 29 : index
    %623 = memref.load %arg2[%c1_261, %c29_262] : memref<4x36xf32, #tpu.memory_space<smem>>
    %624 = vector.broadcast %623 : f32 to vector<1x256xf32>
    %625 = arith.mulf %624, %618 : vector<1x256xf32>
    %626 = arith.addf %605, %625 : vector<1x256xf32>
    %c2_263 = arith.constant 2 : index
    %c29_264 = arith.constant 29 : index
    %627 = memref.load %arg2[%c2_263, %c29_264] : memref<4x36xf32, #tpu.memory_space<smem>>
    %628 = vector.broadcast %627 : f32 to vector<1x256xf32>
    %629 = arith.mulf %628, %618 : vector<1x256xf32>
    %630 = arith.addf %609, %629 : vector<1x256xf32>
    %c3_265 = arith.constant 3 : index
    %c29_266 = arith.constant 29 : index
    %631 = memref.load %arg2[%c3_265, %c29_266] : memref<4x36xf32, #tpu.memory_space<smem>>
    %632 = vector.broadcast %631 : f32 to vector<1x256xf32>
    %633 = arith.mulf %632, %618 : vector<1x256xf32>
    %634 = arith.addf %613, %633 : vector<1x256xf32>
    %cst_267 = arith.constant 0.000000e+00 : f32
    %635 = vector.broadcast %cst_267 : f32 to vector<1x1xf32>
    %636 = vector.extract_strided_slice %573 {offsets = [0, 0], sizes = [1, 255], strides = [1, 1]} : vector<1x256xf32> to vector<1x255xf32>
    %637 = tpu.concatenate %635, %636 in 1 : vector<1x1xf32>, vector<1x255xf32> -> vector<1x256xf32>
    %cst_268 = arith.constant 0.000000e+00 : f32
    %638 = vector.broadcast %cst_268 : f32 to vector<1x256xf32>
    %639 = arith.select %19, %637, %638 : vector<1x256xi1>, vector<1x256xf32>
    %c0_269 = arith.constant 0 : index
    %c30 = arith.constant 30 : index
    %640 = memref.load %arg2[%c0_269, %c30] : memref<4x36xf32, #tpu.memory_space<smem>>
    %641 = vector.broadcast %640 : f32 to vector<1x256xf32>
    %642 = arith.mulf %641, %639 : vector<1x256xf32>
    %643 = arith.addf %622, %642 : vector<1x256xf32>
    %c1_270 = arith.constant 1 : index
    %c30_271 = arith.constant 30 : index
    %644 = memref.load %arg2[%c1_270, %c30_271] : memref<4x36xf32, #tpu.memory_space<smem>>
    %645 = vector.broadcast %644 : f32 to vector<1x256xf32>
    %646 = arith.mulf %645, %639 : vector<1x256xf32>
    %647 = arith.addf %626, %646 : vector<1x256xf32>
    %c2_272 = arith.constant 2 : index
    %c30_273 = arith.constant 30 : index
    %648 = memref.load %arg2[%c2_272, %c30_273] : memref<4x36xf32, #tpu.memory_space<smem>>
    %649 = vector.broadcast %648 : f32 to vector<1x256xf32>
    %650 = arith.mulf %649, %639 : vector<1x256xf32>
    %651 = arith.addf %630, %650 : vector<1x256xf32>
    %c3_274 = arith.constant 3 : index
    %c30_275 = arith.constant 30 : index
    %652 = memref.load %arg2[%c3_274, %c30_275] : memref<4x36xf32, #tpu.memory_space<smem>>
    %653 = vector.broadcast %652 : f32 to vector<1x256xf32>
    %654 = arith.mulf %653, %639 : vector<1x256xf32>
    %655 = arith.addf %634, %654 : vector<1x256xf32>
    %c0_276 = arith.constant 0 : index
    %c31 = arith.constant 31 : index
    %656 = memref.load %arg2[%c0_276, %c31] : memref<4x36xf32, #tpu.memory_space<smem>>
    %657 = vector.broadcast %656 : f32 to vector<1x256xf32>
    %658 = arith.mulf %657, %573 : vector<1x256xf32>
    %659 = arith.addf %643, %658 : vector<1x256xf32>
    %c1_277 = arith.constant 1 : index
    %c31_278 = arith.constant 31 : index
    %660 = memref.load %arg2[%c1_277, %c31_278] : memref<4x36xf32, #tpu.memory_space<smem>>
    %661 = vector.broadcast %660 : f32 to vector<1x256xf32>
    %662 = arith.mulf %661, %573 : vector<1x256xf32>
    %663 = arith.addf %647, %662 : vector<1x256xf32>
    %c2_279 = arith.constant 2 : index
    %c31_280 = arith.constant 31 : index
    %664 = memref.load %arg2[%c2_279, %c31_280] : memref<4x36xf32, #tpu.memory_space<smem>>
    %665 = vector.broadcast %664 : f32 to vector<1x256xf32>
    %666 = arith.mulf %665, %573 : vector<1x256xf32>
    %667 = arith.addf %651, %666 : vector<1x256xf32>
    %c3_281 = arith.constant 3 : index
    %c31_282 = arith.constant 31 : index
    %668 = memref.load %arg2[%c3_281, %c31_282] : memref<4x36xf32, #tpu.memory_space<smem>>
    %669 = vector.broadcast %668 : f32 to vector<1x256xf32>
    %670 = arith.mulf %669, %573 : vector<1x256xf32>
    %671 = arith.addf %655, %670 : vector<1x256xf32>
    %672 = vector.extract_strided_slice %573 {offsets = [0, 1], sizes = [1, 255], strides = [1, 1]} : vector<1x256xf32> to vector<1x255xf32>
    %cst_283 = arith.constant 0.000000e+00 : f32
    %673 = vector.broadcast %cst_283 : f32 to vector<1x1xf32>
    %674 = tpu.concatenate %672, %673 in 1 : vector<1x255xf32>, vector<1x1xf32> -> vector<1x256xf32>
    %cst_284 = arith.constant 0.000000e+00 : f32
    %675 = vector.broadcast %cst_284 : f32 to vector<1x256xf32>
    %676 = arith.select %21, %674, %675 : vector<1x256xi1>, vector<1x256xf32>
    %c0_285 = arith.constant 0 : index
    %c32 = arith.constant 32 : index
    %677 = memref.load %arg2[%c0_285, %c32] : memref<4x36xf32, #tpu.memory_space<smem>>
    %678 = vector.broadcast %677 : f32 to vector<1x256xf32>
    %679 = arith.mulf %678, %676 : vector<1x256xf32>
    %680 = arith.addf %659, %679 : vector<1x256xf32>
    %c1_286 = arith.constant 1 : index
    %c32_287 = arith.constant 32 : index
    %681 = memref.load %arg2[%c1_286, %c32_287] : memref<4x36xf32, #tpu.memory_space<smem>>
    %682 = vector.broadcast %681 : f32 to vector<1x256xf32>
    %683 = arith.mulf %682, %676 : vector<1x256xf32>
    %684 = arith.addf %663, %683 : vector<1x256xf32>
    %c2_288 = arith.constant 2 : index
    %c32_289 = arith.constant 32 : index
    %685 = memref.load %arg2[%c2_288, %c32_289] : memref<4x36xf32, #tpu.memory_space<smem>>
    %686 = vector.broadcast %685 : f32 to vector<1x256xf32>
    %687 = arith.mulf %686, %676 : vector<1x256xf32>
    %688 = arith.addf %667, %687 : vector<1x256xf32>
    %c3_290 = arith.constant 3 : index
    %c32_291 = arith.constant 32 : index
    %689 = memref.load %arg2[%c3_290, %c32_291] : memref<4x36xf32, #tpu.memory_space<smem>>
    %690 = vector.broadcast %689 : f32 to vector<1x256xf32>
    %691 = arith.mulf %690, %676 : vector<1x256xf32>
    %692 = arith.addf %671, %691 : vector<1x256xf32>
    %693 = vector.extract_strided_slice %573 {offsets = [0, 15], sizes = [1, 241], strides = [1, 1]} : vector<1x256xf32> to vector<1x241xf32>
    %cst_292 = arith.constant 0.000000e+00 : f32
    %694 = vector.broadcast %cst_292 : f32 to vector<1x15xf32>
    %695 = tpu.concatenate %693, %694 in 1 : vector<1x241xf32>, vector<1x15xf32> -> vector<1x256xf32>
    %cst_293 = arith.constant 0.000000e+00 : f32
    %696 = vector.broadcast %cst_293 : f32 to vector<1x256xf32>
    %697 = arith.select %19, %695, %696 : vector<1x256xi1>, vector<1x256xf32>
    %c0_294 = arith.constant 0 : index
    %c33 = arith.constant 33 : index
    %698 = memref.load %arg2[%c0_294, %c33] : memref<4x36xf32, #tpu.memory_space<smem>>
    %699 = vector.broadcast %698 : f32 to vector<1x256xf32>
    %700 = arith.mulf %699, %697 : vector<1x256xf32>
    %701 = arith.addf %680, %700 : vector<1x256xf32>
    %c1_295 = arith.constant 1 : index
    %c33_296 = arith.constant 33 : index
    %702 = memref.load %arg2[%c1_295, %c33_296] : memref<4x36xf32, #tpu.memory_space<smem>>
    %703 = vector.broadcast %702 : f32 to vector<1x256xf32>
    %704 = arith.mulf %703, %697 : vector<1x256xf32>
    %705 = arith.addf %684, %704 : vector<1x256xf32>
    %c2_297 = arith.constant 2 : index
    %c33_298 = arith.constant 33 : index
    %706 = memref.load %arg2[%c2_297, %c33_298] : memref<4x36xf32, #tpu.memory_space<smem>>
    %707 = vector.broadcast %706 : f32 to vector<1x256xf32>
    %708 = arith.mulf %707, %697 : vector<1x256xf32>
    %709 = arith.addf %688, %708 : vector<1x256xf32>
    %c3_299 = arith.constant 3 : index
    %c33_300 = arith.constant 33 : index
    %710 = memref.load %arg2[%c3_299, %c33_300] : memref<4x36xf32, #tpu.memory_space<smem>>
    %711 = vector.broadcast %710 : f32 to vector<1x256xf32>
    %712 = arith.mulf %711, %697 : vector<1x256xf32>
    %713 = arith.addf %692, %712 : vector<1x256xf32>
    %714 = vector.extract_strided_slice %573 {offsets = [0, 16], sizes = [1, 240], strides = [1, 1]} : vector<1x256xf32> to vector<1x240xf32>
    %cst_301 = arith.constant 0.000000e+00 : f32
    %715 = vector.broadcast %cst_301 : f32 to vector<1x16xf32>
    %716 = tpu.concatenate %714, %715 in 1 : vector<1x240xf32>, vector<1x16xf32> -> vector<1x256xf32>
    %c0_302 = arith.constant 0 : index
    %c34 = arith.constant 34 : index
    %717 = memref.load %arg2[%c0_302, %c34] : memref<4x36xf32, #tpu.memory_space<smem>>
    %718 = vector.broadcast %717 : f32 to vector<1x256xf32>
    %719 = arith.mulf %718, %716 : vector<1x256xf32>
    %720 = arith.addf %701, %719 : vector<1x256xf32>
    %c1_303 = arith.constant 1 : index
    %c34_304 = arith.constant 34 : index
    %721 = memref.load %arg2[%c1_303, %c34_304] : memref<4x36xf32, #tpu.memory_space<smem>>
    %722 = vector.broadcast %721 : f32 to vector<1x256xf32>
    %723 = arith.mulf %722, %716 : vector<1x256xf32>
    %724 = arith.addf %705, %723 : vector<1x256xf32>
    %c2_305 = arith.constant 2 : index
    %c34_306 = arith.constant 34 : index
    %725 = memref.load %arg2[%c2_305, %c34_306] : memref<4x36xf32, #tpu.memory_space<smem>>
    %726 = vector.broadcast %725 : f32 to vector<1x256xf32>
    %727 = arith.mulf %726, %716 : vector<1x256xf32>
    %728 = arith.addf %709, %727 : vector<1x256xf32>
    %c3_307 = arith.constant 3 : index
    %c34_308 = arith.constant 34 : index
    %729 = memref.load %arg2[%c3_307, %c34_308] : memref<4x36xf32, #tpu.memory_space<smem>>
    %730 = vector.broadcast %729 : f32 to vector<1x256xf32>
    %731 = arith.mulf %730, %716 : vector<1x256xf32>
    %732 = arith.addf %713, %731 : vector<1x256xf32>
    %733 = vector.extract_strided_slice %573 {offsets = [0, 17], sizes = [1, 239], strides = [1, 1]} : vector<1x256xf32> to vector<1x239xf32>
    %cst_309 = arith.constant 0.000000e+00 : f32
    %734 = vector.broadcast %cst_309 : f32 to vector<1x17xf32>
    %735 = tpu.concatenate %733, %734 in 1 : vector<1x239xf32>, vector<1x17xf32> -> vector<1x256xf32>
    %cst_310 = arith.constant 0.000000e+00 : f32
    %736 = vector.broadcast %cst_310 : f32 to vector<1x256xf32>
    %737 = arith.select %21, %735, %736 : vector<1x256xi1>, vector<1x256xf32>
    %c0_311 = arith.constant 0 : index
    %c35 = arith.constant 35 : index
    %738 = memref.load %arg2[%c0_311, %c35] : memref<4x36xf32, #tpu.memory_space<smem>>
    %739 = vector.broadcast %738 : f32 to vector<1x256xf32>
    %740 = arith.mulf %739, %737 : vector<1x256xf32>
    %741 = arith.addf %720, %740 : vector<1x256xf32>
    %c1_312 = arith.constant 1 : index
    %c35_313 = arith.constant 35 : index
    %742 = memref.load %arg2[%c1_312, %c35_313] : memref<4x36xf32, #tpu.memory_space<smem>>
    %743 = vector.broadcast %742 : f32 to vector<1x256xf32>
    %744 = arith.mulf %743, %737 : vector<1x256xf32>
    %745 = arith.addf %724, %744 : vector<1x256xf32>
    %c2_314 = arith.constant 2 : index
    %c35_315 = arith.constant 35 : index
    %746 = memref.load %arg2[%c2_314, %c35_315] : memref<4x36xf32, #tpu.memory_space<smem>>
    %747 = vector.broadcast %746 : f32 to vector<1x256xf32>
    %748 = arith.mulf %747, %737 : vector<1x256xf32>
    %749 = arith.addf %728, %748 : vector<1x256xf32>
    %c3_316 = arith.constant 3 : index
    %c35_317 = arith.constant 35 : index
    %750 = memref.load %arg2[%c3_316, %c35_317] : memref<4x36xf32, #tpu.memory_space<smem>>
    %751 = vector.broadcast %750 : f32 to vector<1x256xf32>
    %752 = arith.mulf %751, %737 : vector<1x256xf32>
    %753 = arith.addf %732, %752 : vector<1x256xf32>
    %c0_318 = arith.constant 0 : index
    %c0_319 = arith.constant 0 : index
    %754 = vector.load %arg4[%c0_318, %c0_319] : memref<4x128xf32, #tpu.memory_space<vmem>>, vector<4x128xf32>
    %c0_320 = arith.constant 0 : index
    %c0_321 = arith.constant 0 : index
    %755 = vector.load %arg5[%c0_320, %c0_321] : memref<1x128xf32, #tpu.memory_space<vmem>>, vector<1x128xf32>
    %c0_322 = arith.constant 0 : index
    %756 = memref.load %arg3[%c0_322] : memref<4xf32, #tpu.memory_space<smem>>
    %757 = vector.broadcast %756 : f32 to vector<1x256xf32>
    %758 = arith.addf %741, %757 : vector<1x256xf32>
    %cst_323 = arith.constant 0.000000e+00 : f32
    %759 = vector.broadcast %cst_323 : f32 to vector<1x256xf32>
    %760 = arith.maximumf %758, %759 : vector<1x256xf32>
    %cst_324 = arith.constant dense<0.000000e+00> : vector<1xf32>
    %761 = vector.multi_reduction <add>, %760, %cst_324 [1] : vector<1x256xf32> to vector<1xf32>
    %762 = vector.shape_cast %761 : vector<1xf32> to vector<1x1xf32>
    %cst_325 = arith.constant 3.906250e-03 : f32
    %763 = vector.broadcast %cst_325 : f32 to vector<1x1xf32>
    %764 = arith.mulf %762, %763 : vector<1x1xf32>
    %765 = vector.extract_strided_slice %754 {offsets = [0, 0], sizes = [1, 128], strides = [1, 1]} : vector<4x128xf32> to vector<1x128xf32>
    %766 = vector.broadcast %764 : vector<1x1xf32> to vector<1x128xf32>
    %767 = arith.mulf %766, %765 : vector<1x128xf32>
    %768 = arith.addf %755, %767 : vector<1x128xf32>
    %c1_326 = arith.constant 1 : index
    %769 = memref.load %arg3[%c1_326] : memref<4xf32, #tpu.memory_space<smem>>
    %770 = vector.broadcast %769 : f32 to vector<1x256xf32>
    %771 = arith.addf %745, %770 : vector<1x256xf32>
    %cst_327 = arith.constant 0.000000e+00 : f32
    %772 = vector.broadcast %cst_327 : f32 to vector<1x256xf32>
    %773 = arith.maximumf %771, %772 : vector<1x256xf32>
    %cst_328 = arith.constant dense<0.000000e+00> : vector<1xf32>
    %774 = vector.multi_reduction <add>, %773, %cst_328 [1] : vector<1x256xf32> to vector<1xf32>
    %775 = vector.shape_cast %774 : vector<1xf32> to vector<1x1xf32>
    %cst_329 = arith.constant 3.906250e-03 : f32
    %776 = vector.broadcast %cst_329 : f32 to vector<1x1xf32>
    %777 = arith.mulf %775, %776 : vector<1x1xf32>
    %778 = vector.extract_strided_slice %754 {offsets = [1, 0], sizes = [1, 128], strides = [1, 1]} : vector<4x128xf32> to vector<1x128xf32>
    %779 = vector.broadcast %777 : vector<1x1xf32> to vector<1x128xf32>
    %780 = arith.mulf %779, %778 : vector<1x128xf32>
    %781 = arith.addf %768, %780 : vector<1x128xf32>
    %c2_330 = arith.constant 2 : index
    %782 = memref.load %arg3[%c2_330] : memref<4xf32, #tpu.memory_space<smem>>
    %783 = vector.broadcast %782 : f32 to vector<1x256xf32>
    %784 = arith.addf %749, %783 : vector<1x256xf32>
    %cst_331 = arith.constant 0.000000e+00 : f32
    %785 = vector.broadcast %cst_331 : f32 to vector<1x256xf32>
    %786 = arith.maximumf %784, %785 : vector<1x256xf32>
    %cst_332 = arith.constant dense<0.000000e+00> : vector<1xf32>
    %787 = vector.multi_reduction <add>, %786, %cst_332 [1] : vector<1x256xf32> to vector<1xf32>
    %788 = vector.shape_cast %787 : vector<1xf32> to vector<1x1xf32>
    %cst_333 = arith.constant 3.906250e-03 : f32
    %789 = vector.broadcast %cst_333 : f32 to vector<1x1xf32>
    %790 = arith.mulf %788, %789 : vector<1x1xf32>
    %791 = vector.extract_strided_slice %754 {offsets = [2, 0], sizes = [1, 128], strides = [1, 1]} : vector<4x128xf32> to vector<1x128xf32>
    %792 = vector.broadcast %790 : vector<1x1xf32> to vector<1x128xf32>
    %793 = arith.mulf %792, %791 : vector<1x128xf32>
    %794 = arith.addf %781, %793 : vector<1x128xf32>
    %c3_334 = arith.constant 3 : index
    %795 = memref.load %arg3[%c3_334] : memref<4xf32, #tpu.memory_space<smem>>
    %796 = vector.broadcast %795 : f32 to vector<1x256xf32>
    %797 = arith.addf %753, %796 : vector<1x256xf32>
    %cst_335 = arith.constant 0.000000e+00 : f32
    %798 = vector.broadcast %cst_335 : f32 to vector<1x256xf32>
    %799 = arith.maximumf %797, %798 : vector<1x256xf32>
    %cst_336 = arith.constant dense<0.000000e+00> : vector<1xf32>
    %800 = vector.multi_reduction <add>, %799, %cst_336 [1] : vector<1x256xf32> to vector<1xf32>
    %801 = vector.shape_cast %800 : vector<1xf32> to vector<1x1xf32>
    %cst_337 = arith.constant 3.906250e-03 : f32
    %802 = vector.broadcast %cst_337 : f32 to vector<1x1xf32>
    %803 = arith.mulf %801, %802 : vector<1x1xf32>
    %804 = vector.extract_strided_slice %754 {offsets = [3, 0], sizes = [1, 128], strides = [1, 1]} : vector<4x128xf32> to vector<1x128xf32>
    %805 = vector.broadcast %803 : vector<1x1xf32> to vector<1x128xf32>
    %806 = arith.mulf %805, %804 : vector<1x128xf32>
    %807 = arith.addf %794, %806 : vector<1x128xf32>
    %808 = vector.shape_cast %807 : vector<1x128xf32> to vector<1x1x128xf32>
    %c0_338 = arith.constant 0 : index
    %c0_339 = arith.constant 0 : index
    %c0_340 = arith.constant 0 : index
    %809 = vector.load %arg6[%c0_338, %c0_339, %c0_340] : memref<1x1x128xf32, #tpu.memory_space<vmem>>, vector<1x1x128xf32>
    tpu.vector_store %arg6[%c0_338, %c0_339, %c0_340], %808 {strides = array<i32>} : memref<1x1x128xf32, #tpu.memory_space<vmem>>, vector<1x1x128xf32>,
    return
  }
  func.func @transform_0(%arg0: i32) -> (i32, i32, i32) {
    %c0_i32 = arith.constant 0 : i32
    %c0_i32_0 = arith.constant 0 : i32
    %c0_i32_1 = arith.constant 0 : i32
    return %arg0, %c0_i32, %c0_i32_0 : i32, i32, i32
  }
  func.func @transform_1(%arg0: i32) -> (i32, i32) {
    %c0_i32 = arith.constant 0 : i32
    %c0_i32_0 = arith.constant 0 : i32
    %c0_i32_1 = arith.constant 0 : i32
    return %c0_i32, %c0_i32_0 : i32, i32
  }
  func.func @transform_2(%arg0: i32) -> i32 {
    %c0_i32 = arith.constant 0 : i32
    %c0_i32_0 = arith.constant 0 : i32
    return %c0_i32 : i32
  }
  func.func @transform_3(%arg0: i32) -> (i32, i32) {
    %c0_i32 = arith.constant 0 : i32
    %c0_i32_0 = arith.constant 0 : i32
    %c0_i32_1 = arith.constant 0 : i32
    return %c0_i32, %c0_i32_0 : i32, i32
  }
  func.func @transform_4(%arg0: i32) -> (i32, i32) {
    %c0_i32 = arith.constant 0 : i32
    %c0_i32_0 = arith.constant 0 : i32
    %c0_i32_1 = arith.constant 0 : i32
    return %c0_i32, %c0_i32_0 : i32, i32
  }
  func.func @transform_5(%arg0: i32) -> (i32, i32, i32) {
    %c0_i32 = arith.constant 0 : i32
    %c0_i32_0 = arith.constant 0 : i32
    %c0_i32_1 = arith.constant 0 : i32
    return %arg0, %c0_i32, %c0_i32_0 : i32, i32, i32
  }
}

</mosaic_0001>

<llo_original>
// kernel: rcnn_forward.1
$region0: #{rcnn_forward.1}
  #allocation0 [shape = 'u32[]', space=smem, size = 0x4, offset = 0x4, fixed_abs, tag = 'smem constant byte address 0x4 - core index']
  #allocation1 [shape = 'u32[72,128]{1,0:T(1,128)}', space=vmem, size = 0x9000, scoped, tag = 'internal scratch']
  %s0 = inlined_call_operand.vmem [shape: f32[2,4,256], index: 0, kind: input, shape index: {}]
  %s1 = inlined_call_operand.vmem [shape: f32[4,36], index: 1, kind: input, shape index: {}]
  %s2 = inlined_call_operand.vmem [shape: f32[4], index: 2, kind: input, shape index: {}]
  %s3 = inlined_call_operand.vmem [shape: f32[4,128], index: 3, kind: input, shape index: {}]
  %s4 = inlined_call_operand.vmem [shape: f32[1,128], index: 4, kind: input, shape index: {}]
  %s5 = inlined_call_operand.vmem [shape: f32[2,1,128], index: 5, kind: output, shape index: {}]
  %s6 = sld [smem:[#allocation0]]
  $region61: #{rcnn_forward.1} parent=0
    _
  %s8 = ssub.s32 1, %s6
  %s9 = scalar_select 0, %s8, %s6
  $region1: #{rcnn_forward.1} parent=0
    #allocation2 [shape = 'u8[2048]{0}', space=smem, size = 0x800, scoped, tag = 'input window, operand 1, single buffered']
    #allocation3 [shape = 's32[2]{0}', space=sflag, size = 0x8, scoped, tag = 'scoped memory for rcnn_forward.1']
    #allocation4 [shape = 'u8[512]{0}', space=smem, size = 0x200, scoped, tag = 'input window, operand 2, single buffered']
    #allocation5 [shape = 's32[1]{0}', space=sflag, size = 0x4, scoped, tag = 'scoped memory for rcnn_forward.1']
    %10 = vsyncpa [#allocation3], 0
    %11 = vsyncpa [#allocation5], 0
    loop: start=0, step=1, limit=4
    $region2: #{rcnn_forward.1} parent=1 // loop_pre_header
      _
    $region3: #{rcnn_forward.1} parent=1 // loop_header
      %s13 = sphi 0, %s17
      %p14 = scmp.ge.s32.totalorder %s13, 4
      %s23 = sphi 0, %s25
      %s26 = sphi 0, %s23
      %s27 = sphi 0, %s26
      %s43 = sphi 0, %s27
      %s47 = sphi 0, %s47
      %s49 = sphi 0, %s47
      %s50 = sphi 0, %s49
      %s64 = sphi 0, %s50
      %s68 = sphi 0, %s68
      %s70 = sphi 0, %s68
      %s71 = sphi 0, %s70
      %s85 = sphi 0, %s71
      %s89 = sphi 0, %s89
      %s91 = sphi 0, %s89
      %s92 = sphi 0, %s91
      %s106 = sphi 0, %s92
      %s110 = sphi 0, %s110
      %s112 = sphi 0, %s110
      %s113 = sphi 0, %s112
      %s127 = sphi 0, %s113
      %s133 = sphi 0, %s135
      %s136 = sphi 0, %s133
      %s137 = sphi 0, %s136
      %s153 = sphi 0, %s137
    $region4: #{rcnn_forward.1} parent=1 // loop_header_branch
      %16 = sbr.rel (%p14) target = $region8
    $region5: #{rcnn_forward.1} parent=1 // loop_body
      %s18 = ssub.s32 %s13, 1
      %s19 = ssub.s32 %s13, 2
      %s20 = sadd.s32 %s13, 1
      %s21 = ssub.s32 %s13, %s20
      %p22 = scmp.eq.s32.totalorder %s21, 0
      %s24 = sadd.s32 %s23, 1
      %s25 = scalar_select %p22, %s23, %s24
      %p28 = pneg %p22
      %p29 = scmp.eq.s32.totalorder %s13, 1
      %p30 = por %p28, %p29
      %p31 = scmp.ne.s32.totalorder %s23, %s26
      %p32 = scmp.eq.s32.totalorder %s13, 0
      %p33 = por %p31, %p32
      %p34 = scmp.ne.s32.totalorder %s23, %s26
      %p35 = scmp.eq.s32.totalorder %s18, 1
      %p36 = por %p34, %p35
      %p37 = scmp.ne.s32.totalorder %s26, %s27
      %p38 = scmp.eq.s32.totalorder %s18, 0
      %p39 = por %p37, %p38
      %p40 = scmp.ne.s32.totalorder %s26, %s27
      %p41 = scmp.eq.s32.totalorder %s19, 1
      %p42 = por %p40, %p41
      %p44 = scmp.ne.s32.totalorder %s27, %s43
      %p45 = scmp.eq.s32.totalorder %s19, 0
      %p46 = por %p44, %p45
      %s48 = sadd.s32 %s47, 1
      %p51 = scmp.eq.s32.totalorder %s13, 1
      %p52 = scmp.ne.s32.totalorder %s47, %s49
      %p53 = scmp.eq.s32.totalorder %s13, 0
      %p54 = por %p52, %p53
      %p55 = scmp.ne.s32.totalorder %s47, %s49
      %p56 = scmp.eq.s32.totalorder %s18, 1
      %p57 = por %p55, %p56
      %p58 = scmp.ne.s32.totalorder %s49, %s50
      %p59 = scmp.eq.s32.totalorder %s18, 0
      %p60 = por %p58, %p59
      %p61 = scmp.ne.s32.totalorder %s49, %s50
      %p62 = scmp.eq.s32.totalorder %s19, 1
      %p63 = por %p61, %p62
      %p65 = scmp.ne.s32.totalorder %s50, %s64
      %p66 = scmp.eq.s32.totalorder %s19, 0
      %p67 = por %p65, %p66
      %s69 = sadd.s32 %s68, 1
      %p72 = scmp.eq.s32.totalorder %s13, 1
      %p73 = scmp.ne.s32.totalorder %s68, %s70
      %p74 = scmp.eq.s32.totalorder %s13, 0
      %p75 = por %p73, %p74
      %p76 = scmp.ne.s32.totalorder %s68, %s70
      %p77 = scmp.eq.s32.totalorder %s18, 1
      %p78 = por %p76, %p77
      %p79 = scmp.ne.s32.totalorder %s70, %s71
      %p80 = scmp.eq.s32.totalorder %s18, 0
      %p81 = por %p79, %p80
      %p82 = scmp.ne.s32.totalorder %s70, %s71
      %p83 = scmp.eq.s32.totalorder %s19, 1
      %p84 = por %p82, %p83
      %p86 = scmp.ne.s32.totalorder %s71, %s85
      %p87 = scmp.eq.s32.totalorder %s19, 0
      %p88 = por %p86, %p87
      %s90 = sadd.s32 %s89, 1
      %p93 = scmp.eq.s32.totalorder %s13, 1
      %p94 = scmp.ne.s32.totalorder %s89, %s91
      %p95 = scmp.eq.s32.totalorder %s13, 0
      %p96 = por %p94, %p95
      %p97 = scmp.ne.s32.totalorder %s89, %s91
      %p98 = scmp.eq.s32.totalorder %s18, 1
      %p99 = por %p97, %p98
      %p100 = scmp.ne.s32.totalorder %s91, %s92
      %p101 = scmp.eq.s32.totalorder %s18, 0
      %p102 = por %p100, %p101
      %p103 = scmp.ne.s32.totalorder %s91, %s92
      %p104 = scmp.eq.s32.totalorder %s19, 1
      %p105 = por %p103, %p104
      %p107 = scmp.ne.s32.totalorder %s92, %s106
      %p108 = scmp.eq.s32.totalorder %s19, 0
      %p109 = por %p107, %p108
      %s111 = sadd.s32 %s110, 1
      %p114 = scmp.eq.s32.totalorder %s13, 1
      %p115 = scmp.ne.s32.totalorder %s110, %s112
      %p116 = scmp.eq.s32.totalorder %s13, 0
      %p117 = por %p115, %p116
      %p118 = scmp.ne.s32.totalorder %s110, %s112
      %p119 = scmp.eq.s32.totalorder %s18, 1
      %p120 = por %p118, %p119
      %p121 = scmp.ne.s32.totalorder %s112, %s113
      %p122 = scmp.eq.s32.totalorder %s18, 0
      %p123 = por %p121, %p122
      %p124 = scmp.ne.s32.totalorder %s112, %s113
      %p125 = scmp.eq.s32.totalorder %s19, 1
      %p126 = por %p124, %p125
      %p128 = scmp.ne.s32.totalorder %s113, %s127
      %p129 = scmp.eq.s32.totalorder %s19, 0
      %p130 = por %p128, %p129
      %s131 = ssub.s32 %s13, %s20
      %p132 = scmp.eq.s32.totalorder %s131, 0
      %s134 = sadd.s32 %s133, 1
      %s135 = scalar_select %p132, %s133, %s134
      %p138 = pneg %p132
      %p139 = scmp.eq.s32.totalorder %s13, 1
      %p140 = por %p138, %p139
      %p141 = scmp.ne.s32.totalorder %s133, %s136
      %p142 = scmp.eq.s32.totalorder %s13, 0
      %p143 = por %p141, %p142
      %p144 = scmp.ne.s32.totalorder %s133, %s136
      %p145 = scmp.eq.s32.totalorder %s18, 1
      %p146 = por %p144, %p145
      %p147 = scmp.ne.s32.totalorder %s136, %s137
      %p148 = scmp.eq.s32.totalorder %s18, 0
      %p149 = por %p147, %p148
      %p150 = scmp.ne.s32.totalorder %s136, %s137
      %p151 = scmp.eq.s32.totalorder %s19, 1
      %p152 = por %p150, %p151
      %p154 = scmp.ne.s32.totalorder %s137, %s153
      %p155 = scmp.eq.s32.totalorder %s19, 0
      %p156 = por %p154, %p155
      %p157 = scmp.le.s32.totalorder 1, %s13
      %p158 = scmp.lt.s32.totalorder %s13, 3
      %p159 = pnand %p157, %p158
      %p160 = pneg %p159
      // Predicated region
      $region9: #{rcnn_forward.1} parent=5 // pred_check
        _
      $region10: #{rcnn_forward.1} parent=5 // pred_check_branch
        %162 = sbr.rel (%p159) target = $region12
      $region11: #{rcnn_forward.1} parent=5 // pred_region
        %s163 = ssub.s32 %s13, 1
        // Predicated region
        $region13: #{rcnn_forward.1} parent=11 // pred_check
          %p164 = pneg %p60
        $region14: #{rcnn_forward.1} parent=11 // pred_check_branch
          %166 = sbr.rel (%p164) target = $region16
        $region15: #{rcnn_forward.1} parent=11 // pred_region
          %168 = vsyncadd [#allocation3], 0
          %s170 = sshll.u32 %s1, 4
          %s171 = int_to_ptr.vmem [resolvable:$true] %s170
          %173 = dma.vmem_to_smem %s171, 64, [#allocation2], [#allocation3]
        $region16: #{rcnn_forward.1} parent=11 // pred_fallthru
          _
        // Predicated region
        $region17: #{rcnn_forward.1} parent=11 // pred_check
          %p174 = pneg %p81
        $region18: #{rcnn_forward.1} parent=11 // pred_check_branch
          %176 = sbr.rel (%p174) target = $region20
        $region19: #{rcnn_forward.1} parent=11 // pred_region
          %178 = vsyncadd [#allocation5], 0
          %s180 = sshll.u32 %s2, 4
          %s181 = int_to_ptr.vmem [resolvable:$true] %s180
          %183 = dma.vmem_to_smem %s181, 16, [#allocation4], [#allocation5]
        $region20: #{rcnn_forward.1} parent=11 // pred_fallthru
          _
        // Predicated region
        $region21: #{rcnn_forward.1} parent=11 // pred_check
          %p184 = pneg %p102
        $region22: #{rcnn_forward.1} parent=11 // pred_check_branch
          %186 = sbr.rel (%p184) target = $region24
        $region23: #{rcnn_forward.1} parent=11 // pred_region
          _
        $region24: #{rcnn_forward.1} parent=11 // pred_fallthru
          _
        // Predicated region
        $region25: #{rcnn_forward.1} parent=11 // pred_check
          %p187 = pneg %p123
        $region26: #{rcnn_forward.1} parent=11 // pred_check_branch
          %189 = sbr.rel (%p187) target = $region28
        $region27: #{rcnn_forward.1} parent=11 // pred_region
          _
        $region28: #{rcnn_forward.1} parent=11 // pred_fallthru
          _
      $region12: #{rcnn_forward.1} parent=5 // pred_fallthru
        _
      %p190 = scmp.lt.s32.totalorder %s13, 2
      // Predicated region
      $region29: #{rcnn_forward.1} parent=5 // pred_check
        %p191 = pneg %p190
      $region30: #{rcnn_forward.1} parent=5 // pred_check_branch
        %193 = sbr.rel (%p191) target = $region32
      $region31: #{rcnn_forward.1} parent=5 // pred_region
        // Predicated region
        $region33: #{rcnn_forward.1} parent=31 // pred_check
          %p194 = pneg %p33
        $region34: #{rcnn_forward.1} parent=31 // pred_check_branch
          %196 = sbr.rel (%p194) target = $region36
        $region35: #{rcnn_forward.1} parent=31 // pred_region
          %p197 = scmp.lt.s32.totalorder %s13, 1
          %s198 = scalar_select %p197, %s13, 1
          %s199 = smul.addr %s198, 2
          %s200 = smul.addr %s199, 4
          %s201 = scalar_lea.vmem %s0, %s200
        $region36: #{rcnn_forward.1} parent=31 // pred_fallthru
          _
      $region32: #{rcnn_forward.1} parent=5 // pred_fallthru
        _
      %p202 = scmp.le.s32.totalorder 1, %s13
      %p203 = scmp.lt.s32.totalorder %s13, 3
      %p204 = pnand %p202, %p203
      %p205 = pneg %p204
      // Predicated region
      $region37: #{rcnn_forward.1} parent=5 // pred_check
        _
      $region38: #{rcnn_forward.1} parent=5 // pred_check_branch
        %207 = sbr.rel (%p204) target = $region40
      $region39: #{rcnn_forward.1} parent=5 // pred_region
        %s208 = ssub.s32 %s13, 1
        // Predicated region
        $region41: #{rcnn_forward.1} parent=39 // pred_check
          %p209 = pneg %p60
        $region42: #{rcnn_forward.1} parent=39 // pred_check_branch
          %211 = sbr.rel (%p209) target = $region44
        $region43: #{rcnn_forward.1} parent=39 // pred_region
          %213 = dma.done [#allocation3], 64
        $region44: #{rcnn_forward.1} parent=39 // pred_fallthru
          _
        // Predicated region
        $region45: #{rcnn_forward.1} parent=39 // pred_check
          %p214 = pneg %p81
        $region46: #{rcnn_forward.1} parent=39 // pred_check_branch
          %216 = sbr.rel (%p214) target = $region48
        $region47: #{rcnn_forward.1} parent=39 // pred_region
          %218 = dma.done [#allocation5], 16
        $region48: #{rcnn_forward.1} parent=39 // pred_fallthru
          _
        %219 = sfence
        %p220 = scmp.lt.s32.totalorder %s18, 1
        %s221 = scalar_select %p220, %s18, 1
        %s222 = smul.addr %s221, 2
        %s223 = smul.addr %s222, 4
        %s224 = scalar_lea.vmem %s0, %s223
        %p225 = pneg %p39
        %p226 = pneg %p36
        %p227 = pneg %p60
        %p228 = pneg %p57
        %p229 = pneg %p81
        %p230 = pneg %p78
        %p231 = pneg %p102
        %p232 = pneg %p99
        %p233 = pneg %p123
        %p234 = pneg %p120
        %p235 = pneg %p149
        %p236 = pneg %p146
        %p237 = scmp.lt.s32.totalorder %s18, 1
        %s238 = scalar_select %p237, %s18, 1
        %s239 = scalar_lea.vmem %s5, %s238
        %p240 = scmp.lt.s32.totalorder %s18, 1
        %s241 = scalar_select %p240, %s18, 1
        %s242 = smul.addr %s241, 2
        %s243 = smul.addr %s242, 4
        %s244 = scalar_lea.vmem %s0, %s243
        %p245 = scmp.lt.s32.totalorder %s18, 1
        %s246 = scalar_select %p245, %s18, 1
        %s247 = scalar_lea.vmem %s5, %s246
        %v248 = vld [vmem:[%s244] sm:$0xff]
        %v249 = vlaneseq
        %v250 = vand.u32 %v249, 127
        %v251 = vadd.s32 %v250, 128
        %vm252 = vcmp.lt.s32.totalorder %v250, 0
        %v253 = vsub.s32 0, %v250
        %v254 = vsel %vm252, %v253, %v250
        %v255 = vshrl.u32 %v254, 4
        %v256 = vand.u32 %v254, 15
        %v257 = vsub.s32 0, %v256
        %v258 = vsel %vm252, %v257, %v256
        %vm259 = vcmp.lt.s32.totalorder %v251, 0
        %v260 = vsub.s32 0, %v251
        %v261 = vsel %vm259, %v260, %v251
        %v262 = vshrl.u32 %v261, 4
        %v263 = vand.u32 %v261, 15
        %v264 = vsub.s32 0, %v263
        %v265 = vsel %vm259, %v264, %v263
        %vm266 = vcmp.ne.s32.totalorder %v258, 0
        %vm267 = vcmp.ne.s32.totalorder %v265, 0
        %vm268 = vcmp.lt.s32.totalorder %v258, 0
        %vm269 = vcmp.lt.s32.totalorder %v265, 0
        %vm270 = vmand %vm268, %vm266
        %vm271 = vmand %vm269, %vm267
        %v272 = vadd.s32 %v258, 16
        %v273 = vadd.s32 %v265, 16
        %v274 = vsel %vm270, %v272, %v258
        %v275 = vsel %vm271, %v273, %v265
        %vm276 = vcmp.ge.s32.totalorder %v274, 1
        %vm277 = vcmp.ge.s32.totalorder %v275, 1
        %vm278 = vcmp.le.s32.totalorder %v274, 14
        %vm279 = vcmp.le.s32.totalorder %v275, 14
        %v281 = vperm.slane %v248, 0
        %v282 = vperm.slane %v248, 4
        %283 = vrot.lane.b32.xlu0 %v281, 17
        %v284 = vpop.permute.xlu0 %283
        %285 = vrot.lane.b32.xlu0 %v282, 17
        %v286 = vpop.permute.xlu0 %285
        %vm287 = vcmask 138240
        %v288 = vsel %vm287, %v284, %v286
        %v291 = vsel %vm287, 0.0, %v284
        %v292 = vsel %vm276, %v291, 0.0
        %v293 = vsel %vm277, %v288, 0.0
        %s294 = sld [smem:[#allocation2]]
        %v295 = vstv %s294
        %v296 = vmul.f32 %v295, %v292
        %v297 = vmul.f32 %v295, %v293
        %v298 = vadd.f32 %v296, 0.0
        %v299 = vadd.f32 %v297, 0.0
        %s300 = sld [smem:[#allocation2 + $0x80]]
        %v301 = vstv %s300
        %v302 = vmul.f32 %v301, %v292
        %v303 = vmul.f32 %v301, %v293
        %v304 = vadd.f32 %v302, 0.0
        %v305 = vadd.f32 %v303, 0.0
        %s306 = sld [smem:[#allocation2 + $0x100]]
        %v307 = vstv %s306
        %v308 = vmul.f32 %v307, %v292
        %v309 = vmul.f32 %v307, %v293
        %v310 = vadd.f32 %v308, 0.0
        %v311 = vadd.f32 %v309, 0.0
        %s312 = sld [smem:[#allocation2 + $0x180]]
        %v313 = vstv %s312
        %v314 = vmul.f32 %v313, %v292
        %v315 = vmul.f32 %v313, %v293
        %v316 = vadd.f32 %v314, 0.0
        %v317 = vadd.f32 %v315, 0.0
        %318 = vrot.lane.b32.xlu0 %v281, 16
        %v319 = vpop.permute.xlu0 %318
        %320 = vrot.lane.b32.xlu0 %v282, 16
        %v321 = vpop.permute.xlu0 %320
        %vm322 = vcmask 130048
        %v323 = vsel %vm322, %v319, %v321
        %v326 = vsel %vm322, 0.0, %v319
        %s327 = sld [smem:[#allocation2 + $0x1]]
        %v328 = vstv %s327
        %v329 = vmul.f32 %v328, %v326
        %v330 = vmul.f32 %v328, %v323
        %v331 = vadd.f32 %v298, %v329
        %v332 = vadd.f32 %v299, %v330
        %s333 = sld [smem:[#allocation2 + $0x81]]
        %v334 = vstv %s333
        %v335 = vmul.f32 %v334, %v326
        %v336 = vmul.f32 %v334, %v323
        %v337 = vadd.f32 %v304, %v335
        %v338 = vadd.f32 %v305, %v336
        %s339 = sld [smem:[#allocation2 + $0x101]]
        %v340 = vstv %s339
        %v341 = vmul.f32 %v340, %v326
        %v342 = vmul.f32 %v340, %v323
        %v343 = vadd.f32 %v310, %v341
        %v344 = vadd.f32 %v311, %v342
        %s345 = sld [smem:[#allocation2 + $0x181]]
        %v346 = vstv %s345
        %v347 = vmul.f32 %v346, %v326
        %v348 = vmul.f32 %v346, %v323
        %v349 = vadd.f32 %v316, %v347
        %v350 = vadd.f32 %v317, %v348
        %351 = vrot.lane.b32.xlu0 %v281, 15
        %v352 = vpop.permute.xlu0 %351
        %353 = vrot.lane.b32.xlu0 %v282, 15
        %v354 = vpop.permute.xlu0 %353
        %vm355 = vcmask 121856
        %v356 = vsel %vm355, %v352, %v354
        %v359 = vsel %vm355, 0.0, %v352
        %v360 = vsel %vm278, %v359, 0.0
        %v361 = vsel %vm279, %v356, 0.0
        %s362 = sld [smem:[#allocation2 + $0x2]]
        %v363 = vstv %s362
        %v364 = vmul.f32 %v363, %v360
        %v365 = vmul.f32 %v363, %v361
        %v366 = vadd.f32 %v331, %v364
        %v367 = vadd.f32 %v332, %v365
        %s368 = sld [smem:[#allocation2 + $0x82]]
        %v369 = vstv %s368
        %v370 = vmul.f32 %v369, %v360
        %v371 = vmul.f32 %v369, %v361
        %v372 = vadd.f32 %v337, %v370
        %v373 = vadd.f32 %v338, %v371
        %s374 = sld [smem:[#allocation2 + $0x102]]
        %v375 = vstv %s374
        %v376 = vmul.f32 %v375, %v360
        %v377 = vmul.f32 %v375, %v361
        %v378 = vadd.f32 %v343, %v376
        %v379 = vadd.f32 %v344, %v377
        %s380 = sld [smem:[#allocation2 + $0x182]]
        %v381 = vstv %s380
        %v382 = vmul.f32 %v381, %v360
        %v383 = vmul.f32 %v381, %v361
        %v384 = vadd.f32 %v349, %v382
        %v385 = vadd.f32 %v350, %v383
        %386 = vrot.lane.b32.xlu0 %v281, 1
        %v387 = vpop.permute.xlu0 %386
        %388 = vrot.lane.b32.xlu0 %v282, 1
        %v389 = vpop.permute.xlu0 %388
        %vm390 = vcmask 7168
        %v391 = vsel %vm390, %v387, %v389
        %v394 = vsel %vm390, 0.0, %v387
        %v395 = vsel %vm276, %v394, 0.0
        %v396 = vsel %vm277, %v391, 0.0
        %s397 = sld [smem:[#allocation2 + $0x3]]
        %v398 = vstv %s397
        %v399 = vmul.f32 %v398, %v395
        %v400 = vmul.f32 %v398, %v396
        %v401 = vadd.f32 %v366, %v399
        %v402 = vadd.f32 %v367, %v400
        %s403 = sld [smem:[#allocation2 + $0x83]]
        %v404 = vstv %s403
        %v405 = vmul.f32 %v404, %v395
        %v406 = vmul.f32 %v404, %v396
        %v407 = vadd.f32 %v372, %v405
        %v408 = vadd.f32 %v373, %v406
        %s409 = sld [smem:[#allocation2 + $0x103]]
        %v410 = vstv %s409
        %v411 = vmul.f32 %v410, %v395
        %v412 = vmul.f32 %v410, %v396
        %v413 = vadd.f32 %v378, %v411
        %v414 = vadd.f32 %v379, %v412
        %s415 = sld [smem:[#allocation2 + $0x183]]
        %v416 = vstv %s415
        %v417 = vmul.f32 %v416, %v395
        %v418 = vmul.f32 %v416, %v396
        %v419 = vadd.f32 %v384, %v417
        %v420 = vadd.f32 %v385, %v418
        %s421 = sld [smem:[#allocation2 + $0x4]]
        %v422 = vstv %s421
        %v423 = vmul.f32 %v422, %v248
        %v425 = vperm.slane %v423, 0
        %v426 = vperm.slane %v423, 4
        %v429 = vadd.f32 %v401, %v425
        %v430 = vadd.f32 %v402, %v426
        %s431 = sld [smem:[#allocation2 + $0x84]]
        %v432 = vstv %s431
        %v433 = vmul.f32 %v432, %v248
        %v435 = vperm.slane %v433, 0
        %v436 = vperm.slane %v433, 4
        %v439 = vadd.f32 %v407, %v435
        %v440 = vadd.f32 %v408, %v436
        %s441 = sld [smem:[#allocation2 + $0x104]]
        %v442 = vstv %s441
        %v443 = vmul.f32 %v442, %v248
        %v445 = vperm.slane %v443, 0
        %v446 = vperm.slane %v443, 4
        %v449 = vadd.f32 %v413, %v445
        %v450 = vadd.f32 %v414, %v446
        %s451 = sld [smem:[#allocation2 + $0x184]]
        %v452 = vstv %s451
        %v453 = vmul.f32 %v452, %v248
        %v455 = vperm.slane %v453, 0
        %v456 = vperm.slane %v453, 4
        %v459 = vadd.f32 %v419, %v455
        %v460 = vadd.f32 %v420, %v456
        %461 = vrot.lane.b32.xlu0 %v281, 127
        %v462 = vpop.permute.xlu0 %461
        %463 = vrot.lane.b32.xlu0 %v282, 127
        %v464 = vpop.permute.xlu0 %463
        %vm465 = vcmask 1039360
        %v466 = vsel %vm465, %v462, %v464
        %v469 = vsel %vm465, %v464, 0.0
        %v470 = vsel %vm278, %v466, 0.0
        %v471 = vsel %vm279, %v469, 0.0
        %s472 = sld [smem:[#allocation2 + $0x5]]
        %v473 = vstv %s472
        %v474 = vmul.f32 %v473, %v470
        %v475 = vmul.f32 %v473, %v471
        %v476 = vadd.f32 %v429, %v474
        %v477 = vadd.f32 %v430, %v475
        %s478 = sld [smem:[#allocation2 + $0x85]]
        %v479 = vstv %s478
        %v480 = vmul.f32 %v479, %v470
        %v481 = vmul.f32 %v479, %v471
        %v482 = vadd.f32 %v439, %v480
        %v483 = vadd.f32 %v440, %v481
        %s484 = sld [smem:[#allocation2 + $0x105]]
        %v485 = vstv %s484
        %v486 = vmul.f32 %v485, %v470
        %v487 = vmul.f32 %v485, %v471
        %v488 = vadd.f32 %v449, %v486
        %v489 = vadd.f32 %v450, %v487
        %s490 = sld [smem:[#allocation2 + $0x185]]
        %v491 = vstv %s490
        %v492 = vmul.f32 %v491, %v470
        %v493 = vmul.f32 %v491, %v471
        %v494 = vadd.f32 %v459, %v492
        %v495 = vadd.f32 %v460, %v493
        %496 = vrot.lane.b32.xlu0 %v281, 113
        %v497 = vpop.permute.xlu0 %496
        %498 = vrot.lane.b32.xlu0 %v282, 113
        %v499 = vpop.permute.xlu0 %498
        %vm500 = vcmask 924672
        %v501 = vsel %vm500, %v497, %v499
        %v504 = vsel %vm500, %v499, 0.0
        %v505 = vsel %vm276, %v501, 0.0
        %v506 = vsel %vm277, %v504, 0.0
        %s507 = sld [smem:[#allocation2 + $0x6]]
        %v508 = vstv %s507
        %v509 = vmul.f32 %v508, %v505
        %v510 = vmul.f32 %v508, %v506
        %v511 = vadd.f32 %v476, %v509
        %v512 = vadd.f32 %v477, %v510
        %s513 = sld [smem:[#allocation2 + $0x86]]
        %v514 = vstv %s513
        %v515 = vmul.f32 %v514, %v505
        %v516 = vmul.f32 %v514, %v506
        %v517 = vadd.f32 %v482, %v515
        %v518 = vadd.f32 %v483, %v516
        %s519 = sld [smem:[#allocation2 + $0x106]]
        %v520 = vstv %s519
        %v521 = vmul.f32 %v520, %v505
        %v522 = vmul.f32 %v520, %v506
        %v523 = vadd.f32 %v488, %v521
        %v524 = vadd.f32 %v489, %v522
        %s525 = sld [smem:[#allocation2 + $0x186]]
        %v526 = vstv %s525
        %v527 = vmul.f32 %v526, %v505
        %v528 = vmul.f32 %v526, %v506
        %v529 = vadd.f32 %v494, %v527
        %v530 = vadd.f32 %v495, %v528
        %531 = vrot.lane.b32.xlu0 %v281, 112
        %v532 = vpop.permute.xlu0 %531
        %533 = vrot.lane.b32.xlu0 %v282, 112
        %v534 = vpop.permute.xlu0 %533
        %vm535 = vcmask 916480
        %v536 = vsel %vm535, %v532, %v534
        %v539 = vsel %vm535, %v534, 0.0
        %s540 = sld [smem:[#allocation2 + $0x7]]
        %v541 = vstv %s540
        %v542 = vmul.f32 %v541, %v536
        %v543 = vmul.f32 %v541, %v539
        %v544 = vadd.f32 %v511, %v542
        %v545 = vadd.f32 %v512, %v543
        %s546 = sld [smem:[#allocation2 + $0x87]]
        %v547 = vstv %s546
        %v548 = vmul.f32 %v547, %v536
        %v549 = vmul.f32 %v547, %v539
        %v550 = vadd.f32 %v517, %v548
        %v551 = vadd.f32 %v518, %v549
        %s552 = sld [smem:[#allocation2 + $0x107]]
        %v553 = vstv %s552
        %v554 = vmul.f32 %v553, %v536
        %v555 = vmul.f32 %v553, %v539
        %v556 = vadd.f32 %v523, %v554
        %v557 = vadd.f32 %v524, %v555
        %s558 = sld [smem:[#allocation2 + $0x187]]
        %v559 = vstv %s558
        %v560 = vmul.f32 %v559, %v536
        %v561 = vmul.f32 %v559, %v539
        %v562 = vadd.f32 %v529, %v560
        %v563 = vadd.f32 %v530, %v561
        %564 = vrot.lane.b32.xlu0 %v281, 111
        %v565 = vpop.permute.xlu0 %564
        %566 = vrot.lane.b32.xlu0 %v282, 111
        %v567 = vpop.permute.xlu0 %566
        %vm568 = vcmask 908288
        %v569 = vsel %vm568, %v565, %v567
        %v572 = vsel %vm568, %v567, 0.0
        %v573 = vsel %vm278, %v569, 0.0
        %v574 = vsel %vm279, %v572, 0.0
        %s575 = sld [smem:[#allocation2 + $0x8]]
        %v576 = vstv %s575
        %v577 = vmul.f32 %v576, %v573
        %v578 = vmul.f32 %v576, %v574
        %v579 = vadd.f32 %v544, %v577
        %v580 = vadd.f32 %v545, %v578
        %s581 = sld [smem:[#allocation2 + $0x88]]
        %v582 = vstv %s581
        %v583 = vmul.f32 %v582, %v573
        %v584 = vmul.f32 %v582, %v574
        %v585 = vadd.f32 %v550, %v583
        %v586 = vadd.f32 %v551, %v584
        %s587 = sld [smem:[#allocation2 + $0x108]]
        %v588 = vstv %s587
        %v589 = vmul.f32 %v588, %v573
        %v590 = vmul.f32 %v588, %v574
        %v591 = vadd.f32 %v556, %v589
        %v592 = vadd.f32 %v557, %v590
        %s593 = sld [smem:[#allocation2 + $0x188]]
        %v594 = vstv %s593
        %v595 = vmul.f32 %v594, %v573
        %v596 = vmul.f32 %v594, %v574
        %v597 = vadd.f32 %v562, %v595
        %v598 = vadd.f32 %v563, %v596
        %v599 = vperm.slane %v248, 1
        %v600 = vperm.slane %v248, 5
        %601 = vrot.lane.b32.xlu0 %v599, 17
        %v602 = vpop.permute.xlu0 %601
        %603 = vrot.lane.b32.xlu0 %v600, 17
        %v604 = vpop.permute.xlu0 %603
        %v605 = vsel %vm287, %v602, %v604
        %v608 = vsel %vm287, 0.0, %v602
        %v609 = vsel %vm276, %v608, 0.0
        %v610 = vsel %vm277, %v605, 0.0
        %s611 = sld [smem:[#allocation2 + $0x9]]
        %v612 = vstv %s611
        %v613 = vmul.f32 %v612, %v609
        %v614 = vmul.f32 %v612, %v610
        %v615 = vadd.f32 %v579, %v613
        %v616 = vadd.f32 %v580, %v614
        %s617 = sld [smem:[#allocation2 + $0x89]]
        %v618 = vstv %s617
        %v619 = vmul.f32 %v618, %v609
        %v620 = vmul.f32 %v618, %v610
        %v621 = vadd.f32 %v585, %v619
        %v622 = vadd.f32 %v586, %v620
        %s623 = sld [smem:[#allocation2 + $0x109]]
        %v624 = vstv %s623
        %v625 = vmul.f32 %v624, %v609
        %v626 = vmul.f32 %v624, %v610
        %v627 = vadd.f32 %v591, %v625
        %v628 = vadd.f32 %v592, %v626
        %s629 = sld [smem:[#allocation2 + $0x189]]
        %v630 = vstv %s629
        %v631 = vmul.f32 %v630, %v609
        %v632 = vmul.f32 %v630, %v610
        %v633 = vadd.f32 %v597, %v631
        %v634 = vadd.f32 %v598, %v632
        %635 = vrot.lane.b32.xlu0 %v599, 16
        %v636 = vpop.permute.xlu0 %635
        %637 = vrot.lane.b32.xlu0 %v600, 16
        %v638 = vpop.permute.xlu0 %637
        %v639 = vsel %vm322, %v636, %v638
        %v642 = vsel %vm322, 0.0, %v636
        %s643 = sld [smem:[#allocation2 + $0xa]]
        %v644 = vstv %s643
        %v645 = vmul.f32 %v644, %v642
        %v646 = vmul.f32 %v644, %v639
        %v647 = vadd.f32 %v615, %v645
        %v648 = vadd.f32 %v616, %v646
        %s649 = sld [smem:[#allocation2 + $0x8a]]
        %v650 = vstv %s649
        %v651 = vmul.f32 %v650, %v642
        %v652 = vmul.f32 %v650, %v639
        %v653 = vadd.f32 %v621, %v651
        %v654 = vadd.f32 %v622, %v652
        %s655 = sld [smem:[#allocation2 + $0x10a]]
        %v656 = vstv %s655
        %v657 = vmul.f32 %v656, %v642
        %v658 = vmul.f32 %v656, %v639
        %v659 = vadd.f32 %v627, %v657
        %v660 = vadd.f32 %v628, %v658
        %s661 = sld [smem:[#allocation2 + $0x18a]]
        %v662 = vstv %s661
        %v663 = vmul.f32 %v662, %v642
        %v664 = vmul.f32 %v662, %v639
        %v665 = vadd.f32 %v633, %v663
        %v666 = vadd.f32 %v634, %v664
        %667 = vrot.lane.b32.xlu0 %v599, 15
        %v668 = vpop.permute.xlu0 %667
        %669 = vrot.lane.b32.xlu0 %v600, 15
        %v670 = vpop.permute.xlu0 %669
        %v671 = vsel %vm355, %v668, %v670
        %v674 = vsel %vm355, 0.0, %v668
        %v675 = vsel %vm278, %v674, 0.0
        %v676 = vsel %vm279, %v671, 0.0
        %s677 = sld [smem:[#allocation2 + $0xb]]
        %v678 = vstv %s677
        %v679 = vmul.f32 %v678, %v675
        %v680 = vmul.f32 %v678, %v676
        %v681 = vadd.f32 %v647, %v679
        %v682 = vadd.f32 %v648, %v680
        %s683 = sld [smem:[#allocation2 + $0x8b]]
        %v684 = vstv %s683
        %v685 = vmul.f32 %v684, %v675
        %v686 = vmul.f32 %v684, %v676
        %v687 = vadd.f32 %v653, %v685
        %v688 = vadd.f32 %v654, %v686
        %s689 = sld [smem:[#allocation2 + $0x10b]]
        %v690 = vstv %s689
        %v691 = vmul.f32 %v690, %v675
        %v692 = vmul.f32 %v690, %v676
        %v693 = vadd.f32 %v659, %v691
        %v694 = vadd.f32 %v660, %v692
        %s695 = sld [smem:[#allocation2 + $0x18b]]
        %v696 = vstv %s695
        %v697 = vmul.f32 %v696, %v675
        %v698 = vmul.f32 %v696, %v676
        %v699 = vadd.f32 %v665, %v697
        %v700 = vadd.f32 %v666, %v698
        %701 = vrot.lane.b32.xlu0 %v599, 1
        %v702 = vpop.permute.xlu0 %701
        %703 = vrot.lane.b32.xlu0 %v600, 1
        %v704 = vpop.permute.xlu0 %703
        %v705 = vsel %vm390, %v702, %v704
        %v708 = vsel %vm390, 0.0, %v702
        %v709 = vsel %vm276, %v708, 0.0
        %v710 = vsel %vm277, %v705, 0.0
        %s711 = sld [smem:[#allocation2 + $0xc]]
        %v712 = vstv %s711
        %v713 = vmul.f32 %v712, %v709
        %v714 = vmul.f32 %v712, %v710
        %v715 = vadd.f32 %v681, %v713
        %v716 = vadd.f32 %v682, %v714
        %s717 = sld [smem:[#allocation2 + $0x8c]]
        %v718 = vstv %s717
        %v719 = vmul.f32 %v718, %v709
        %v720 = vmul.f32 %v718, %v710
        %v721 = vadd.f32 %v687, %v719
        %v722 = vadd.f32 %v688, %v720
        %s723 = sld [smem:[#allocation2 + $0x10c]]
        %v724 = vstv %s723
        %v725 = vmul.f32 %v724, %v709
        %v726 = vmul.f32 %v724, %v710
        %v727 = vadd.f32 %v693, %v725
        %v728 = vadd.f32 %v694, %v726
        %s729 = sld [smem:[#allocation2 + $0x18c]]
        %v730 = vstv %s729
        %v731 = vmul.f32 %v730, %v709
        %v732 = vmul.f32 %v730, %v710
        %v733 = vadd.f32 %v699, %v731
        %v734 = vadd.f32 %v700, %v732
        %s735 = sld [smem:[#allocation2 + $0xd]]
        %v736 = vstv %s735
        %v737 = vmul.f32 %v736, %v248
        %v739 = vperm.slane %v737, 1
        %v740 = vperm.slane %v737, 5
        %v743 = vadd.f32 %v715, %v739
        %v744 = vadd.f32 %v716, %v740
        %s745 = sld [smem:[#allocation2 + $0x8d]]
        %v746 = vstv %s745
        %v747 = vmul.f32 %v746, %v248
        %v749 = vperm.slane %v747, 1
        %v750 = vperm.slane %v747, 5
        %v753 = vadd.f32 %v721, %v749
        %v754 = vadd.f32 %v722, %v750
        %s755 = sld [smem:[#allocation2 + $0x10d]]
        %v756 = vstv %s755
        %v757 = vmul.f32 %v756, %v248
        %v759 = vperm.slane %v757, 1
        %v760 = vperm.slane %v757, 5
        %v763 = vadd.f32 %v727, %v759
        %v764 = vadd.f32 %v728, %v760
        %s765 = sld [smem:[#allocation2 + $0x18d]]
        %v766 = vstv %s765
        %v767 = vmul.f32 %v766, %v248
        %v769 = vperm.slane %v767, 1
        %v770 = vperm.slane %v767, 5
        %v773 = vadd.f32 %v733, %v769
        %v774 = vadd.f32 %v734, %v770
        %775 = vrot.lane.b32.xlu0 %v599, 127
        %v776 = vpop.permute.xlu0 %775
        %777 = vrot.lane.b32.xlu0 %v600, 127
        %v778 = vpop.permute.xlu0 %777
        %v779 = vsel %vm465, %v776, %v778
        %v782 = vsel %vm465, %v778, 0.0
        %v783 = vsel %vm278, %v779, 0.0
        %v784 = vsel %vm279, %v782, 0.0
        %s785 = sld [smem:[#allocation2 + $0xe]]
        %v786 = vstv %s785
        %v787 = vmul.f32 %v786, %v783
        %v788 = vmul.f32 %v786, %v784
        %v791 = vrot.slane %v787, 1
        %v792 = vrot.slane %v788, 1
        %v795 = vadd.f32 %v743, %v791
        %v796 = vadd.f32 %v744, %v792
        %s797 = sld [smem:[#allocation2 + $0x8e]]
        %v798 = vstv %s797
        %v799 = vmul.f32 %v798, %v783
        %v800 = vmul.f32 %v798, %v784
        %v803 = vrot.slane %v799, 1
        %v804 = vrot.slane %v800, 1
        %v807 = vadd.f32 %v753, %v803
        %v808 = vadd.f32 %v754, %v804
        %s809 = sld [smem:[#allocation2 + $0x10e]]
        %v810 = vstv %s809
        %v811 = vmul.f32 %v810, %v783
        %v812 = vmul.f32 %v810, %v784
        %v815 = vrot.slane %v811, 1
        %v816 = vrot.slane %v812, 1
        %v819 = vadd.f32 %v763, %v815
        %v820 = vadd.f32 %v764, %v816
        %s821 = sld [smem:[#allocation2 + $0x18e]]
        %v822 = vstv %s821
        %v823 = vmul.f32 %v822, %v783
        %v824 = vmul.f32 %v822, %v784
        %v827 = vrot.slane %v823, 1
        %v828 = vrot.slane %v824, 1
        %v831 = vadd.f32 %v773, %v827
        %v832 = vadd.f32 %v774, %v828
        %833 = vrot.lane.b32.xlu0 %v599, 113
        %v834 = vpop.permute.xlu0 %833
        %835 = vrot.lane.b32.xlu0 %v600, 113
        %v836 = vpop.permute.xlu0 %835
        %v837 = vsel %vm500, %v834, %v836
        %v840 = vsel %vm500, %v836, 0.0
        %v841 = vsel %vm276, %v837, 0.0
        %v842 = vsel %vm277, %v840, 0.0
        %s843 = sld [smem:[#allocation2 + $0xf]]
        %v844 = vstv %s843
        %v845 = vmul.f32 %v844, %v841
        %v846 = vmul.f32 %v844, %v842
        %v849 = vrot.slane %v845, 1
        %v850 = vrot.slane %v846, 1
        %v853 = vadd.f32 %v795, %v849
        %v854 = vadd.f32 %v796, %v850
        %s855 = sld [smem:[#allocation2 + $0x8f]]
        %v856 = vstv %s855
        %v857 = vmul.f32 %v856, %v841
        %v858 = vmul.f32 %v856, %v842
        %v861 = vrot.slane %v857, 1
        %v862 = vrot.slane %v858, 1
        %v865 = vadd.f32 %v807, %v861
        %v866 = vadd.f32 %v808, %v862
        %s867 = sld [smem:[#allocation2 + $0x10f]]
        %v868 = vstv %s867
        %v869 = vmul.f32 %v868, %v841
        %v870 = vmul.f32 %v868, %v842
        %v873 = vrot.slane %v869, 1
        %v874 = vrot.slane %v870, 1
        %v877 = vadd.f32 %v819, %v873
        %v878 = vadd.f32 %v820, %v874
        %s879 = sld [smem:[#allocation2 + $0x18f]]
        %v880 = vstv %s879
        %v881 = vmul.f32 %v880, %v841
        %v882 = vmul.f32 %v880, %v842
        %v885 = vrot.slane %v881, 1
        %v886 = vrot.slane %v882, 1
        %v889 = vadd.f32 %v831, %v885
        %v890 = vadd.f32 %v832, %v886
        %891 = vrot.lane.b32.xlu0 %v599, 112
        %v892 = vpop.permute.xlu0 %891
        %893 = vrot.lane.b32.xlu0 %v600, 112
        %v894 = vpop.permute.xlu0 %893
        %v895 = vsel %vm535, %v892, %v894
        %v898 = vsel %vm535, %v894, 0.0
        %s899 = sld [smem:[#allocation2 + $0x10]]
        %v900 = vstv %s899
        %v901 = vmul.f32 %v900, %v895
        %v902 = vmul.f32 %v900, %v898
        %v905 = vrot.slane %v901, 1
        %v906 = vrot.slane %v902, 1
        %v909 = vadd.f32 %v853, %v905
        %v910 = vadd.f32 %v854, %v906
        %s911 = sld [smem:[#allocation2 + $0x90]]
        %v912 = vstv %s911
        %v913 = vmul.f32 %v912, %v895
        %v914 = vmul.f32 %v912, %v898
        %v917 = vrot.slane %v913, 1
        %v918 = vrot.slane %v914, 1
        %v921 = vadd.f32 %v865, %v917
        %v922 = vadd.f32 %v866, %v918
        %s923 = sld [smem:[#allocation2 + $0x110]]
        %v924 = vstv %s923
        %v925 = vmul.f32 %v924, %v895
        %v926 = vmul.f32 %v924, %v898
        %v929 = vrot.slane %v925, 1
        %v930 = vrot.slane %v926, 1
        %v933 = vadd.f32 %v877, %v929
        %v934 = vadd.f32 %v878, %v930
        %s935 = sld [smem:[#allocation2 + $0x190]]
        %v936 = vstv %s935
        %v937 = vmul.f32 %v936, %v895
        %v938 = vmul.f32 %v936, %v898
        %v941 = vrot.slane %v937, 1
        %v942 = vrot.slane %v938, 1
        %v945 = vadd.f32 %v889, %v941
        %v946 = vadd.f32 %v890, %v942
        %947 = vrot.lane.b32.xlu0 %v599, 111
        %v948 = vpop.permute.xlu0 %947
        %949 = vrot.lane.b32.xlu0 %v600, 111
        %v950 = vpop.permute.xlu0 %949
        %v951 = vsel %vm568, %v948, %v950
        %v954 = vsel %vm568, %v950, 0.0
        %v955 = vsel %vm278, %v951, 0.0
        %v956 = vsel %vm279, %v954, 0.0
        %s957 = sld [smem:[#allocation2 + $0x11]]
        %v958 = vstv %s957
        %v959 = vmul.f32 %v958, %v955
        %v960 = vmul.f32 %v958, %v956
        %v963 = vrot.slane %v959, 1
        %v964 = vrot.slane %v960, 1
        %v967 = vadd.f32 %v909, %v963
        %v968 = vadd.f32 %v910, %v964
        %s969 = sld [smem:[#allocation2 + $0x91]]
        %v970 = vstv %s969
        %v971 = vmul.f32 %v970, %v955
        %v972 = vmul.f32 %v970, %v956
        %v975 = vrot.slane %v971, 1
        %v976 = vrot.slane %v972, 1
        %v979 = vadd.f32 %v921, %v975
        %v980 = vadd.f32 %v922, %v976
        %s981 = sld [smem:[#allocation2 + $0x111]]
        %v982 = vstv %s981
        %v983 = vmul.f32 %v982, %v955
        %v984 = vmul.f32 %v982, %v956
        %v987 = vrot.slane %v983, 1
        %v988 = vrot.slane %v984, 1
        %v991 = vadd.f32 %v933, %v987
        %v992 = vadd.f32 %v934, %v988
        %s993 = sld [smem:[#allocation2 + $0x191]]
        %v994 = vstv %s993
        %v995 = vmul.f32 %v994, %v955
        %v996 = vmul.f32 %v994, %v956
        %v999 = vrot.slane %v995, 1
        %v1000 = vrot.slane %v996, 1
        %v1003 = vadd.f32 %v945, %v999
        %v1004 = vadd.f32 %v946, %v1000
        %v1005 = vperm.slane %v248, 2
        %v1006 = vperm.slane %v248, 6
        %1007 = vrot.lane.b32.xlu0 %v1005, 17
        %v1008 = vpop.permute.xlu0 %1007
        %1009 = vrot.lane.b32.xlu0 %v1006, 17
        %v1010 = vpop.permute.xlu0 %1009
        %v1011 = vsel %vm287, %v1008, %v1010
        %v1014 = vsel %vm287, 0.0, %v1008
        %v1015 = vsel %vm276, %v1014, 0.0
        %v1016 = vsel %vm277, %v1011, 0.0
        %s1017 = sld [smem:[#allocation2 + $0x12]]
        %v1018 = vstv %s1017
        %v1019 = vmul.f32 %v1018, %v1015
        %v1020 = vmul.f32 %v1018, %v1016
        %v1021 = vadd.f32 %v967, %v1019
        %v1022 = vadd.f32 %v968, %v1020
        %s1023 = sld [smem:[#allocation2 + $0x92]]
        %v1024 = vstv %s1023
        %v1025 = vmul.f32 %v1024, %v1015
        %v1026 = vmul.f32 %v1024, %v1016
        %v1027 = vadd.f32 %v979, %v1025
        %v1028 = vadd.f32 %v980, %v1026
        %s1029 = sld [smem:[#allocation2 + $0x112]]
        %v1030 = vstv %s1029
        %v1031 = vmul.f32 %v1030, %v1015
        %v1032 = vmul.f32 %v1030, %v1016
        %v1033 = vadd.f32 %v991, %v1031
        %v1034 = vadd.f32 %v992, %v1032
        %s1035 = sld [smem:[#allocation2 + $0x192]]
        %v1036 = vstv %s1035
        %v1037 = vmul.f32 %v1036, %v1015
        %v1038 = vmul.f32 %v1036, %v1016
        %v1039 = vadd.f32 %v1003, %v1037
        %v1040 = vadd.f32 %v1004, %v1038
        %1041 = vrot.lane.b32.xlu0 %v1005, 16
        %v1042 = vpop.permute.xlu0 %1041
        %1043 = vrot.lane.b32.xlu0 %v1006, 16
        %v1044 = vpop.permute.xlu0 %1043
        %v1045 = vsel %vm322, %v1042, %v1044
        %v1048 = vsel %vm322, 0.0, %v1042
        %s1049 = sld [smem:[#allocation2 + $0x13]]
        %v1050 = vstv %s1049
        %v1051 = vmul.f32 %v1050, %v1048
        %v1052 = vmul.f32 %v1050, %v1045
        %v1053 = vadd.f32 %v1021, %v1051
        %v1054 = vadd.f32 %v1022, %v1052
        %s1055 = sld [smem:[#allocation2 + $0x93]]
        %v1056 = vstv %s1055
        %v1057 = vmul.f32 %v1056, %v1048
        %v1058 = vmul.f32 %v1056, %v1045
        %v1059 = vadd.f32 %v1027, %v1057
        %v1060 = vadd.f32 %v1028, %v1058
        %s1061 = sld [smem:[#allocation2 + $0x113]]
        %v1062 = vstv %s1061
        %v1063 = vmul.f32 %v1062, %v1048
        %v1064 = vmul.f32 %v1062, %v1045
        %v1065 = vadd.f32 %v1033, %v1063
        %v1066 = vadd.f32 %v1034, %v1064
        %s1067 = sld [smem:[#allocation2 + $0x193]]
        %v1068 = vstv %s1067
        %v1069 = vmul.f32 %v1068, %v1048
        %v1070 = vmul.f32 %v1068, %v1045
        %v1071 = vadd.f32 %v1039, %v1069
        %v1072 = vadd.f32 %v1040, %v1070
        %1073 = vrot.lane.b32.xlu0 %v1005, 15
        %v1074 = vpop.permute.xlu0 %1073
        %1075 = vrot.lane.b32.xlu0 %v1006, 15
        %v1076 = vpop.permute.xlu0 %1075
        %v1077 = vsel %vm355, %v1074, %v1076
        %v1080 = vsel %vm355, 0.0, %v1074
        %v1081 = vsel %vm278, %v1080, 0.0
        %v1082 = vsel %vm279, %v1077, 0.0
        %s1083 = sld [smem:[#allocation2 + $0x14]]
        %v1084 = vstv %s1083
        %v1085 = vmul.f32 %v1084, %v1081
        %v1086 = vmul.f32 %v1084, %v1082
        %v1087 = vadd.f32 %v1053, %v1085
        %v1088 = vadd.f32 %v1054, %v1086
        %s1089 = sld [smem:[#allocation2 + $0x94]]
        %v1090 = vstv %s1089
        %v1091 = vmul.f32 %v1090, %v1081
        %v1092 = vmul.f32 %v1090, %v1082
        %v1093 = vadd.f32 %v1059, %v1091
        %v1094 = vadd.f32 %v1060, %v1092
        %s1095 = sld [smem:[#allocation2 + $0x114]]
        %v1096 = vstv %s1095
        %v1097 = vmul.f32 %v1096, %v1081
        %v1098 = vmul.f32 %v1096, %v1082
        %v1099 = vadd.f32 %v1065, %v1097
        %v1100 = vadd.f32 %v1066, %v1098
        %s1101 = sld [smem:[#allocation2 + $0x194]]
        %v1102 = vstv %s1101
        %v1103 = vmul.f32 %v1102, %v1081
        %v1104 = vmul.f32 %v1102, %v1082
        %v1105 = vadd.f32 %v1071, %v1103
        %v1106 = vadd.f32 %v1072, %v1104
        %1107 = vrot.lane.b32.xlu0 %v1005, 1
        %v1108 = vpop.permute.xlu0 %1107
        %1109 = vrot.lane.b32.xlu0 %v1006, 1
        %v1110 = vpop.permute.xlu0 %1109
        %v1111 = vsel %vm390, %v1108, %v1110
        %v1114 = vsel %vm390, 0.0, %v1108
        %v1115 = vsel %vm276, %v1114, 0.0
        %v1116 = vsel %vm277, %v1111, 0.0
        %s1117 = sld [smem:[#allocation2 + $0x15]]
        %v1118 = vstv %s1117
        %v1119 = vmul.f32 %v1118, %v1115
        %v1120 = vmul.f32 %v1118, %v1116
        %v1121 = vadd.f32 %v1087, %v1119
        %v1122 = vadd.f32 %v1088, %v1120
        %s1123 = sld [smem:[#allocation2 + $0x95]]
        %v1124 = vstv %s1123
        %v1125 = vmul.f32 %v1124, %v1115
        %v1126 = vmul.f32 %v1124, %v1116
        %v1127 = vadd.f32 %v1093, %v1125
        %v1128 = vadd.f32 %v1094, %v1126
        %s1129 = sld [smem:[#allocation2 + $0x115]]
        %v1130 = vstv %s1129
        %v1131 = vmul.f32 %v1130, %v1115
        %v1132 = vmul.f32 %v1130, %v1116
        %v1133 = vadd.f32 %v1099, %v1131
        %v1134 = vadd.f32 %v1100, %v1132
        %s1135 = sld [smem:[#allocation2 + $0x195]]
        %v1136 = vstv %s1135
        %v1137 = vmul.f32 %v1136, %v1115
        %v1138 = vmul.f32 %v1136, %v1116
        %v1139 = vadd.f32 %v1105, %v1137
        %v1140 = vadd.f32 %v1106, %v1138
        %s1141 = sld [smem:[#allocation2 + $0x16]]
        %v1142 = vstv %s1141
        %v1143 = vmul.f32 %v1142, %v248
        %v1145 = vperm.slane %v1143, 2
        %v1146 = vperm.slane %v1143, 6
        %v1149 = vadd.f32 %v1121, %v1145
        %v1150 = vadd.f32 %v1122, %v1146
        %s1151 = sld [smem:[#allocation2 + $0x96]]
        %v1152 = vstv %s1151
        %v1153 = vmul.f32 %v1152, %v248
        %v1155 = vperm.slane %v1153, 2
        %v1156 = vperm.slane %v1153, 6
        %v1159 = vadd.f32 %v1127, %v1155
        %v1160 = vadd.f32 %v1128, %v1156
        %s1161 = sld [smem:[#allocation2 + $0x116]]
        %v1162 = vstv %s1161
        %v1163 = vmul.f32 %v1162, %v248
        %v1165 = vperm.slane %v1163, 2
        %v1166 = vperm.slane %v1163, 6
        %v1169 = vadd.f32 %v1133, %v1165
        %v1170 = vadd.f32 %v1134, %v1166
        %s1171 = sld [smem:[#allocation2 + $0x196]]
        %v1172 = vstv %s1171
        %v1173 = vmul.f32 %v1172, %v248
        %v1175 = vperm.slane %v1173, 2
        %v1176 = vperm.slane %v1173, 6
        %v1179 = vadd.f32 %v1139, %v1175
        %v1180 = vadd.f32 %v1140, %v1176
        %1181 = vrot.lane.b32.xlu0 %v1005, 127
        %v1182 = vpop.permute.xlu0 %1181
        %1183 = vrot.lane.b32.xlu0 %v1006, 127
        %v1184 = vpop.permute.xlu0 %1183
        %v1185 = vsel %vm465, %v1182, %v1184
        %v1188 = vsel %vm465, %v1184, 0.0
        %v1189 = vsel %vm278, %v1185, 0.0
        %v1190 = vsel %vm279, %v1188, 0.0
        %s1191 = sld [smem:[#allocation2 + $0x17]]
        %v1192 = vstv %s1191
        %v1193 = vmul.f32 %v1192, %v1189
        %v1194 = vmul.f32 %v1192, %v1190
        %v1197 = vrot.slane %v1193, 2
        %v1198 = vrot.slane %v1194, 2
        %v1201 = vadd.f32 %v1149, %v1197
        %v1202 = vadd.f32 %v1150, %v1198
        %s1203 = sld [smem:[#allocation2 + $0x97]]
        %v1204 = vstv %s1203
        %v1205 = vmul.f32 %v1204, %v1189
        %v1206 = vmul.f32 %v1204, %v1190
        %v1209 = vrot.slane %v1205, 2
        %v1210 = vrot.slane %v1206, 2
        %v1213 = vadd.f32 %v1159, %v1209
        %v1214 = vadd.f32 %v1160, %v1210
        %s1215 = sld [smem:[#allocation2 + $0x117]]
        %v1216 = vstv %s1215
        %v1217 = vmul.f32 %v1216, %v1189
        %v1218 = vmul.f32 %v1216, %v1190
        %v1221 = vrot.slane %v1217, 2
        %v1222 = vrot.slane %v1218, 2
        %v1225 = vadd.f32 %v1169, %v1221
        %v1226 = vadd.f32 %v1170, %v1222
        %s1227 = sld [smem:[#allocation2 + $0x197]]
        %v1228 = vstv %s1227
        %v1229 = vmul.f32 %v1228, %v1189
        %v1230 = vmul.f32 %v1228, %v1190
        %v1233 = vrot.slane %v1229, 2
        %v1234 = vrot.slane %v1230, 2
        %v1237 = vadd.f32 %v1179, %v1233
        %v1238 = vadd.f32 %v1180, %v1234
        %1239 = vrot.lane.b32.xlu0 %v1005, 113
        %v1240 = vpop.permute.xlu0 %1239
        %1241 = vrot.lane.b32.xlu0 %v1006, 113
        %v1242 = vpop.permute.xlu0 %1241
        %v1243 = vsel %vm500, %v1240, %v1242
        %v1246 = vsel %vm500, %v1242, 0.0
        %v1247 = vsel %vm276, %v1243, 0.0
        %v1248 = vsel %vm277, %v1246, 0.0
        %s1249 = sld [smem:[#allocation2 + $0x18]]
        %v1250 = vstv %s1249
        %v1251 = vmul.f32 %v1250, %v1247
        %v1252 = vmul.f32 %v1250, %v1248
        %v1255 = vrot.slane %v1251, 2
        %v1256 = vrot.slane %v1252, 2
        %v1259 = vadd.f32 %v1201, %v1255
        %v1260 = vadd.f32 %v1202, %v1256
        %s1261 = sld [smem:[#allocation2 + $0x98]]
        %v1262 = vstv %s1261
        %v1263 = vmul.f32 %v1262, %v1247
        %v1264 = vmul.f32 %v1262, %v1248
        %v1267 = vrot.slane %v1263, 2
        %v1268 = vrot.slane %v1264, 2
        %v1271 = vadd.f32 %v1213, %v1267
        %v1272 = vadd.f32 %v1214, %v1268
        %s1273 = sld [smem:[#allocation2 + $0x118]]
        %v1274 = vstv %s1273
        %v1275 = vmul.f32 %v1274, %v1247
        %v1276 = vmul.f32 %v1274, %v1248
        %v1279 = vrot.slane %v1275, 2
        %v1280 = vrot.slane %v1276, 2
        %v1283 = vadd.f32 %v1225, %v1279
        %v1284 = vadd.f32 %v1226, %v1280
        %s1285 = sld [smem:[#allocation2 + $0x198]]
        %v1286 = vstv %s1285
        %v1287 = vmul.f32 %v1286, %v1247
        %v1288 = vmul.f32 %v1286, %v1248
        %v1291 = vrot.slane %v1287, 2
        %v1292 = vrot.slane %v1288, 2
        %v1295 = vadd.f32 %v1237, %v1291
        %v1296 = vadd.f32 %v1238, %v1292
        %1297 = vrot.lane.b32.xlu0 %v1005, 112
        %v1298 = vpop.permute.xlu0 %1297
        %1299 = vrot.lane.b32.xlu0 %v1006, 112
        %v1300 = vpop.permute.xlu0 %1299
        %v1301 = vsel %vm535, %v1298, %v1300
        %v1304 = vsel %vm535, %v1300, 0.0
        %s1305 = sld [smem:[#allocation2 + $0x19]]
        %v1306 = vstv %s1305
        %v1307 = vmul.f32 %v1306, %v1301
        %v1308 = vmul.f32 %v1306, %v1304
        %v1311 = vrot.slane %v1307, 2
        %v1312 = vrot.slane %v1308, 2
        %v1315 = vadd.f32 %v1259, %v1311
        %v1316 = vadd.f32 %v1260, %v1312
        %s1317 = sld [smem:[#allocation2 + $0x99]]
        %v1318 = vstv %s1317
        %v1319 = vmul.f32 %v1318, %v1301
        %v1320 = vmul.f32 %v1318, %v1304
        %v1323 = vrot.slane %v1319, 2
        %v1324 = vrot.slane %v1320, 2
        %v1327 = vadd.f32 %v1271, %v1323
        %v1328 = vadd.f32 %v1272, %v1324
        %s1329 = sld [smem:[#allocation2 + $0x119]]
        %v1330 = vstv %s1329
        %v1331 = vmul.f32 %v1330, %v1301
        %v1332 = vmul.f32 %v1330, %v1304
        %v1335 = vrot.slane %v1331, 2
        %v1336 = vrot.slane %v1332, 2
        %v1339 = vadd.f32 %v1283, %v1335
        %v1340 = vadd.f32 %v1284, %v1336
        %s1341 = sld [smem:[#allocation2 + $0x199]]
        %v1342 = vstv %s1341
        %v1343 = vmul.f32 %v1342, %v1301
        %v1344 = vmul.f32 %v1342, %v1304
        %v1347 = vrot.slane %v1343, 2
        %v1348 = vrot.slane %v1344, 2
        %v1351 = vadd.f32 %v1295, %v1347
        %v1352 = vadd.f32 %v1296, %v1348
        %1353 = vrot.lane.b32.xlu0 %v1005, 111
        %v1354 = vpop.permute.xlu0 %1353
        %1355 = vrot.lane.b32.xlu0 %v1006, 111
        %v1356 = vpop.permute.xlu0 %1355
        %v1357 = vsel %vm568, %v1354, %v1356
        %v1360 = vsel %vm568, %v1356, 0.0
        %v1361 = vsel %vm278, %v1357, 0.0
        %v1362 = vsel %vm279, %v1360, 0.0
        %s1363 = sld [smem:[#allocation2 + $0x1a]]
        %v1364 = vstv %s1363
        %v1365 = vmul.f32 %v1364, %v1361
        %v1366 = vmul.f32 %v1364, %v1362
        %v1369 = vrot.slane %v1365, 2
        %v1370 = vrot.slane %v1366, 2
        %v1373 = vadd.f32 %v1315, %v1369
        %v1374 = vadd.f32 %v1316, %v1370
        %s1375 = sld [smem:[#allocation2 + $0x9a]]
        %v1376 = vstv %s1375
        %v1377 = vmul.f32 %v1376, %v1361
        %v1378 = vmul.f32 %v1376, %v1362
        %v1381 = vrot.slane %v1377, 2
        %v1382 = vrot.slane %v1378, 2
        %v1385 = vadd.f32 %v1327, %v1381
        %v1386 = vadd.f32 %v1328, %v1382
        %s1387 = sld [smem:[#allocation2 + $0x11a]]
        %v1388 = vstv %s1387
        %v1389 = vmul.f32 %v1388, %v1361
        %v1390 = vmul.f32 %v1388, %v1362
        %v1393 = vrot.slane %v1389, 2
        %v1394 = vrot.slane %v1390, 2
        %v1397 = vadd.f32 %v1339, %v1393
        %v1398 = vadd.f32 %v1340, %v1394
        %s1399 = sld [smem:[#allocation2 + $0x19a]]
        %v1400 = vstv %s1399
        %v1401 = vmul.f32 %v1400, %v1361
        %v1402 = vmul.f32 %v1400, %v1362
        %v1405 = vrot.slane %v1401, 2
        %v1406 = vrot.slane %v1402, 2
        %v1409 = vadd.f32 %v1351, %v1405
        %v1410 = vadd.f32 %v1352, %v1406
        %v1411 = vperm.slane %v248, 3
        %v1412 = vperm.slane %v248, 7
        %1413 = vrot.lane.b32.xlu0 %v1411, 17
        %v1414 = vpop.permute.xlu0 %1413
        %1415 = vrot.lane.b32.xlu0 %v1412, 17
        %v1416 = vpop.permute.xlu0 %1415
        %v1417 = vsel %vm287, %v1414, %v1416
        %v1420 = vsel %vm287, 0.0, %v1414
        %v1421 = vsel %vm276, %v1420, 0.0
        %v1422 = vsel %vm277, %v1417, 0.0
        %s1423 = sld [smem:[#allocation2 + $0x1b]]
        %v1424 = vstv %s1423
        %v1425 = vmul.f32 %v1424, %v1421
        %v1426 = vmul.f32 %v1424, %v1422
        %v1427 = vadd.f32 %v1373, %v1425
        %v1428 = vadd.f32 %v1374, %v1426
        %s1429 = sld [smem:[#allocation2 + $0x9b]]
        %v1430 = vstv %s1429
        %v1431 = vmul.f32 %v1430, %v1421
        %v1432 = vmul.f32 %v1430, %v1422
        %v1433 = vadd.f32 %v1385, %v1431
        %v1434 = vadd.f32 %v1386, %v1432
        %s1435 = sld [smem:[#allocation2 + $0x11b]]
        %v1436 = vstv %s1435
        %v1437 = vmul.f32 %v1436, %v1421
        %v1438 = vmul.f32 %v1436, %v1422
        %v1439 = vadd.f32 %v1397, %v1437
        %v1440 = vadd.f32 %v1398, %v1438
        %s1441 = sld [smem:[#allocation2 + $0x19b]]
        %v1442 = vstv %s1441
        %v1443 = vmul.f32 %v1442, %v1421
        %v1444 = vmul.f32 %v1442, %v1422
        %v1445 = vadd.f32 %v1409, %v1443
        %v1446 = vadd.f32 %v1410, %v1444
        %1447 = vrot.lane.b32.xlu0 %v1411, 16
        %v1448 = vpop.permute.xlu0 %1447
        %1449 = vrot.lane.b32.xlu0 %v1412, 16
        %v1450 = vpop.permute.xlu0 %1449
        %v1451 = vsel %vm322, %v1448, %v1450
        %v1454 = vsel %vm322, 0.0, %v1448
        %s1455 = sld [smem:[#allocation2 + $0x1c]]
        %v1456 = vstv %s1455
        %v1457 = vmul.f32 %v1456, %v1454
        %v1458 = vmul.f32 %v1456, %v1451
        %v1459 = vadd.f32 %v1427, %v1457
        %v1460 = vadd.f32 %v1428, %v1458
        %s1461 = sld [smem:[#allocation2 + $0x9c]]
        %v1462 = vstv %s1461
        %v1463 = vmul.f32 %v1462, %v1454
        %v1464 = vmul.f32 %v1462, %v1451
        %v1465 = vadd.f32 %v1433, %v1463
        %v1466 = vadd.f32 %v1434, %v1464
        %s1467 = sld [smem:[#allocation2 + $0x11c]]
        %v1468 = vstv %s1467
        %v1469 = vmul.f32 %v1468, %v1454
        %v1470 = vmul.f32 %v1468, %v1451
        %v1471 = vadd.f32 %v1439, %v1469
        %v1472 = vadd.f32 %v1440, %v1470
        %s1473 = sld [smem:[#allocation2 + $0x19c]]
        %v1474 = vstv %s1473
        %v1475 = vmul.f32 %v1474, %v1454
        %v1476 = vmul.f32 %v1474, %v1451
        %v1477 = vadd.f32 %v1445, %v1475
        %v1478 = vadd.f32 %v1446, %v1476
        %1479 = vrot.lane.b32.xlu0 %v1411, 15
        %v1480 = vpop.permute.xlu0 %1479
        %1481 = vrot.lane.b32.xlu0 %v1412, 15
        %v1482 = vpop.permute.xlu0 %1481
        %v1483 = vsel %vm355, %v1480, %v1482
        %v1486 = vsel %vm355, 0.0, %v1480
        %v1487 = vsel %vm278, %v1486, 0.0
        %v1488 = vsel %vm279, %v1483, 0.0
        %s1489 = sld [smem:[#allocation2 + $0x1d]]
        %v1490 = vstv %s1489
        %v1491 = vmul.f32 %v1490, %v1487
        %v1492 = vmul.f32 %v1490, %v1488
        %v1493 = vadd.f32 %v1459, %v1491
        %v1494 = vadd.f32 %v1460, %v1492
        %s1495 = sld [smem:[#allocation2 + $0x9d]]
        %v1496 = vstv %s1495
        %v1497 = vmul.f32 %v1496, %v1487
        %v1498 = vmul.f32 %v1496, %v1488
        %v1499 = vadd.f32 %v1465, %v1497
        %v1500 = vadd.f32 %v1466, %v1498
        %s1501 = sld [smem:[#allocation2 + $0x11d]]
        %v1502 = vstv %s1501
        %v1503 = vmul.f32 %v1502, %v1487
        %v1504 = vmul.f32 %v1502, %v1488
        %v1505 = vadd.f32 %v1471, %v1503
        %v1506 = vadd.f32 %v1472, %v1504
        %s1507 = sld [smem:[#allocation2 + $0x19d]]
        %v1508 = vstv %s1507
        %v1509 = vmul.f32 %v1508, %v1487
        %v1510 = vmul.f32 %v1508, %v1488
        %v1511 = vadd.f32 %v1477, %v1509
        %v1512 = vadd.f32 %v1478, %v1510
        %1513 = vrot.lane.b32.xlu0 %v1411, 1
        %v1514 = vpop.permute.xlu0 %1513
        %1515 = vrot.lane.b32.xlu0 %v1412, 1
        %v1516 = vpop.permute.xlu0 %1515
        %v1517 = vsel %vm390, %v1514, %v1516
        %v1520 = vsel %vm390, 0.0, %v1514
        %v1521 = vsel %vm276, %v1520, 0.0
        %v1522 = vsel %vm277, %v1517, 0.0
        %s1523 = sld [smem:[#allocation2 + $0x1e]]
        %v1524 = vstv %s1523
        %v1525 = vmul.f32 %v1524, %v1521
        %v1526 = vmul.f32 %v1524, %v1522
        %v1527 = vadd.f32 %v1493, %v1525
        %v1528 = vadd.f32 %v1494, %v1526
        %s1529 = sld [smem:[#allocation2 + $0x9e]]
        %v1530 = vstv %s1529
        %v1531 = vmul.f32 %v1530, %v1521
        %v1532 = vmul.f32 %v1530, %v1522
        %v1533 = vadd.f32 %v1499, %v1531
        %v1534 = vadd.f32 %v1500, %v1532
        %s1535 = sld [smem:[#allocation2 + $0x11e]]
        %v1536 = vstv %s1535
        %v1537 = vmul.f32 %v1536, %v1521
        %v1538 = vmul.f32 %v1536, %v1522
        %v1539 = vadd.f32 %v1505, %v1537
        %v1540 = vadd.f32 %v1506, %v1538
        %s1541 = sld [smem:[#allocation2 + $0x19e]]
        %v1542 = vstv %s1541
        %v1543 = vmul.f32 %v1542, %v1521
        %v1544 = vmul.f32 %v1542, %v1522
        %v1545 = vadd.f32 %v1511, %v1543
        %v1546 = vadd.f32 %v1512, %v1544
        %s1547 = sld [smem:[#allocation2 + $0x1f]]
        %v1548 = vstv %s1547
        %v1549 = vmul.f32 %v1548, %v248
        %v1551 = vperm.slane %v1549, 3
        %v1552 = vperm.slane %v1549, 7
        %v1555 = vadd.f32 %v1527, %v1551
        %v1556 = vadd.f32 %v1528, %v1552
        %s1557 = sld [smem:[#allocation2 + $0x9f]]
        %v1558 = vstv %s1557
        %v1559 = vmul.f32 %v1558, %v248
        %v1561 = vperm.slane %v1559, 3
        %v1562 = vperm.slane %v1559, 7
        %v1565 = vadd.f32 %v1533, %v1561
        %v1566 = vadd.f32 %v1534, %v1562
        %s1567 = sld [smem:[#allocation2 + $0x11f]]
        %v1568 = vstv %s1567
        %v1569 = vmul.f32 %v1568, %v248
        %v1571 = vperm.slane %v1569, 3
        %v1572 = vperm.slane %v1569, 7
        %v1575 = vadd.f32 %v1539, %v1571
        %v1576 = vadd.f32 %v1540, %v1572
        %s1577 = sld [smem:[#allocation2 + $0x19f]]
        %v1578 = vstv %s1577
        %v1579 = vmul.f32 %v1578, %v248
        %v1581 = vperm.slane %v1579, 3
        %v1582 = vperm.slane %v1579, 7
        %v1585 = vadd.f32 %v1545, %v1581
        %v1586 = vadd.f32 %v1546, %v1582
        %1587 = vrot.lane.b32.xlu0 %v1411, 127
        %v1588 = vpop.permute.xlu0 %1587
        %1589 = vrot.lane.b32.xlu0 %v1412, 127
        %v1590 = vpop.permute.xlu0 %1589
        %v1591 = vsel %vm465, %v1588, %v1590
        %v1594 = vsel %vm465, %v1590, 0.0
        %v1595 = vsel %vm278, %v1591, 0.0
        %v1596 = vsel %vm279, %v1594, 0.0
        %s1597 = sld [smem:[#allocation2 + $0x20]]
        %v1598 = vstv %s1597
        %v1599 = vmul.f32 %v1598, %v1595
        %v1600 = vmul.f32 %v1598, %v1596
        %v1603 = vrot.slane %v1599, 3
        %v1604 = vrot.slane %v1600, 3
        %v1607 = vadd.f32 %v1555, %v1603
        %v1608 = vadd.f32 %v1556, %v1604
        %s1609 = sld [smem:[#allocation2 + $0xa0]]
        %v1610 = vstv %s1609
        %v1611 = vmul.f32 %v1610, %v1595
        %v1612 = vmul.f32 %v1610, %v1596
        %v1615 = vrot.slane %v1611, 3
        %v1616 = vrot.slane %v1612, 3
        %v1619 = vadd.f32 %v1565, %v1615
        %v1620 = vadd.f32 %v1566, %v1616
        %s1621 = sld [smem:[#allocation2 + $0x120]]
        %v1622 = vstv %s1621
        %v1623 = vmul.f32 %v1622, %v1595
        %v1624 = vmul.f32 %v1622, %v1596
        %v1627 = vrot.slane %v1623, 3
        %v1628 = vrot.slane %v1624, 3
        %v1631 = vadd.f32 %v1575, %v1627
        %v1632 = vadd.f32 %v1576, %v1628
        %s1633 = sld [smem:[#allocation2 + $0x1a0]]
        %v1634 = vstv %s1633
        %v1635 = vmul.f32 %v1634, %v1595
        %v1636 = vmul.f32 %v1634, %v1596
        %v1639 = vrot.slane %v1635, 3
        %v1640 = vrot.slane %v1636, 3
        %v1643 = vadd.f32 %v1585, %v1639
        %v1644 = vadd.f32 %v1586, %v1640
        %1645 = vrot.lane.b32.xlu0 %v1411, 113
        %v1646 = vpop.permute.xlu0 %1645
        %1647 = vrot.lane.b32.xlu0 %v1412, 113
        %v1648 = vpop.permute.xlu0 %1647
        %v1649 = vsel %vm500, %v1646, %v1648
        %v1652 = vsel %vm500, %v1648, 0.0
        %v1653 = vsel %vm276, %v1649, 0.0
        %v1654 = vsel %vm277, %v1652, 0.0
        %s1655 = sld [smem:[#allocation2 + $0x21]]
        %v1656 = vstv %s1655
        %v1657 = vmul.f32 %v1656, %v1653
        %v1658 = vmul.f32 %v1656, %v1654
        %v1661 = vrot.slane %v1657, 3
        %v1662 = vrot.slane %v1658, 3
        %v1665 = vadd.f32 %v1607, %v1661
        %v1666 = vadd.f32 %v1608, %v1662
        %s1667 = sld [smem:[#allocation2 + $0xa1]]
        %v1668 = vstv %s1667
        %v1669 = vmul.f32 %v1668, %v1653
        %v1670 = vmul.f32 %v1668, %v1654
        %v1673 = vrot.slane %v1669, 3
        %v1674 = vrot.slane %v1670, 3
        %v1677 = vadd.f32 %v1619, %v1673
        %v1678 = vadd.f32 %v1620, %v1674
        %s1679 = sld [smem:[#allocation2 + $0x121]]
        %v1680 = vstv %s1679
        %v1681 = vmul.f32 %v1680, %v1653
        %v1682 = vmul.f32 %v1680, %v1654
        %v1685 = vrot.slane %v1681, 3
        %v1686 = vrot.slane %v1682, 3
        %v1689 = vadd.f32 %v1631, %v1685
        %v1690 = vadd.f32 %v1632, %v1686
        %s1691 = sld [smem:[#allocation2 + $0x1a1]]
        %v1692 = vstv %s1691
        %v1693 = vmul.f32 %v1692, %v1653
        %v1694 = vmul.f32 %v1692, %v1654
        %v1697 = vrot.slane %v1693, 3
        %v1698 = vrot.slane %v1694, 3
        %v1701 = vadd.f32 %v1643, %v1697
        %v1702 = vadd.f32 %v1644, %v1698
        %1703 = vrot.lane.b32.xlu0 %v1411, 112
        %v1704 = vpop.permute.xlu0 %1703
        %1705 = vrot.lane.b32.xlu0 %v1412, 112
        %v1706 = vpop.permute.xlu0 %1705
        %v1707 = vsel %vm535, %v1704, %v1706
        %v1710 = vsel %vm535, %v1706, 0.0
        %s1711 = sld [smem:[#allocation2 + $0x22]]
        %v1712 = vstv %s1711
        %v1713 = vmul.f32 %v1712, %v1707
        %v1714 = vmul.f32 %v1712, %v1710
        %v1717 = vrot.slane %v1713, 3
        %v1718 = vrot.slane %v1714, 3
        %v1721 = vadd.f32 %v1665, %v1717
        %v1722 = vadd.f32 %v1666, %v1718
        %s1723 = sld [smem:[#allocation2 + $0xa2]]
        %v1724 = vstv %s1723
        %v1725 = vmul.f32 %v1724, %v1707
        %v1726 = vmul.f32 %v1724, %v1710
        %v1729 = vrot.slane %v1725, 3
        %v1730 = vrot.slane %v1726, 3
        %v1733 = vadd.f32 %v1677, %v1729
        %v1734 = vadd.f32 %v1678, %v1730
        %s1735 = sld [smem:[#allocation2 + $0x122]]
        %v1736 = vstv %s1735
        %v1737 = vmul.f32 %v1736, %v1707
        %v1738 = vmul.f32 %v1736, %v1710
        %v1741 = vrot.slane %v1737, 3
        %v1742 = vrot.slane %v1738, 3
        %v1745 = vadd.f32 %v1689, %v1741
        %v1746 = vadd.f32 %v1690, %v1742
        %s1747 = sld [smem:[#allocation2 + $0x1a2]]
        %v1748 = vstv %s1747
        %v1749 = vmul.f32 %v1748, %v1707
        %v1750 = vmul.f32 %v1748, %v1710
        %v1753 = vrot.slane %v1749, 3
        %v1754 = vrot.slane %v1750, 3
        %v1757 = vadd.f32 %v1701, %v1753
        %v1758 = vadd.f32 %v1702, %v1754
        %1759 = vrot.lane.b32.xlu0 %v1411, 111
        %v1760 = vpop.permute.xlu0 %1759
        %1761 = vrot.lane.b32.xlu0 %v1412, 111
        %v1762 = vpop.permute.xlu0 %1761
        %v1763 = vsel %vm568, %v1760, %v1762
        %v1766 = vsel %vm568, %v1762, 0.0
        %v1767 = vsel %vm278, %v1763, 0.0
        %v1768 = vsel %vm279, %v1766, 0.0
        %s1769 = sld [smem:[#allocation2 + $0x23]]
        %v1770 = vstv %s1769
        %v1771 = vmul.f32 %v1770, %v1767
        %v1772 = vmul.f32 %v1770, %v1768
        %v1775 = vrot.slane %v1771, 3
        %v1776 = vrot.slane %v1772, 3
        %v1779 = vadd.f32 %v1721, %v1775
        %v1780 = vadd.f32 %v1722, %v1776
        %s1781 = sld [smem:[#allocation2 + $0xa3]]
        %v1782 = vstv %s1781
        %v1783 = vmul.f32 %v1782, %v1767
        %v1784 = vmul.f32 %v1782, %v1768
        %v1787 = vrot.slane %v1783, 3
        %v1788 = vrot.slane %v1784, 3
        %v1791 = vadd.f32 %v1733, %v1787
        %v1792 = vadd.f32 %v1734, %v1788
        %s1793 = sld [smem:[#allocation2 + $0x123]]
        %v1794 = vstv %s1793
        %v1795 = vmul.f32 %v1794, %v1767
        %v1796 = vmul.f32 %v1794, %v1768
        %v1799 = vrot.slane %v1795, 3
        %v1800 = vrot.slane %v1796, 3
        %v1803 = vadd.f32 %v1745, %v1799
        %v1804 = vadd.f32 %v1746, %v1800
        %s1805 = sld [smem:[#allocation2 + $0x1a3]]
        %v1806 = vstv %s1805
        %v1807 = vmul.f32 %v1806, %v1767
        %v1808 = vmul.f32 %v1806, %v1768
        %v1811 = vrot.slane %v1807, 3
        %v1812 = vrot.slane %v1808, 3
        %v1815 = vadd.f32 %v1757, %v1811
        %v1816 = vadd.f32 %v1758, %v1812
        %v1817 = vld [vmem:[%s3] sm:$0xf]
        %v1818 = vld [vmem:[%s4] sm:$0x1]
        %s1819 = sld [smem:[#allocation4]]
        %v1820 = vstv %s1819
        %v1821 = vadd.f32 %v1779, %v1820
        %v1822 = vadd.f32 %v1780, %v1820
        %v1823 = vmax.f32 %v1821, 0.0
        %v1824 = vmax.f32 %v1822, 0.0
        %vm1825 = vcmask 1040384
        %v1826 = vsel %vm1825, %v1823, 0.0
        %v1827 = vsel %vm1825, %v1824, 0.0
        %v1828 = vadd.f32 %v1826, %v1827
        %1829 = vadd.xlane.f32.xlu0 %v1828
        %v1830 = vpop.xlane.xlu0 %1829
        %v1831 = vmul.f32 %v1830, 0.00390625
        %v1832 = vmul.f32 %v1831, %v1817
        %v1833 = vadd.f32 %v1818, %v1832
        %s1834 = sld [smem:[#allocation4 + $0x1]]
        %v1835 = vstv %s1834
        %v1836 = vadd.f32 %v1791, %v1835
        %v1837 = vadd.f32 %v1792, %v1835
        %v1838 = vmax.f32 %v1836, 0.0
        %v1839 = vmax.f32 %v1837, 0.0
        %v1840 = vsel %vm1825, %v1838, 0.0
        %v1841 = vsel %vm1825, %v1839, 0.0
        %v1842 = vadd.f32 %v1840, %v1841
        %1843 = vadd.xlane.f32.xlu0 %v1842
        %v1844 = vpop.xlane.xlu0 %1843
        %v1845 = vmul.f32 %v1844, 0.00390625
        %v1847 = vrot.slane %v1817, 1
        %v1849 = vmul.f32 %v1845, %v1847
        %v1850 = vadd.f32 %v1833, %v1849
        %s1851 = sld [smem:[#allocation4 + $0x2]]
        %v1852 = vstv %s1851
        %v1853 = vadd.f32 %v1803, %v1852
        %v1854 = vadd.f32 %v1804, %v1852
        %v1855 = vmax.f32 %v1853, 0.0
        %v1856 = vmax.f32 %v1854, 0.0
        %v1857 = vsel %vm1825, %v1855, 0.0
        %v1858 = vsel %vm1825, %v1856, 0.0
        %v1859 = vadd.f32 %v1857, %v1858
        %1860 = vadd.xlane.f32.xlu0 %v1859
        %v1861 = vpop.xlane.xlu0 %1860
        %v1862 = vmul.f32 %v1861, 0.00390625
        %v1863 = vrot.slane %v1817, 2
        %v1865 = vmul.f32 %v1862, %v1863
        %v1866 = vadd.f32 %v1850, %v1865
        %s1867 = sld [smem:[#allocation4 + $0x3]]
        %v1868 = vstv %s1867
        %v1869 = vadd.f32 %v1815, %v1868
        %v1870 = vadd.f32 %v1816, %v1868
        %v1871 = vmax.f32 %v1869, 0.0
        %v1872 = vmax.f32 %v1870, 0.0
        %v1873 = vsel %vm1825, %v1871, 0.0
        %v1874 = vsel %vm1825, %v1872, 0.0
        %v1875 = vadd.f32 %v1873, %v1874
        %1876 = vadd.xlane.f32.xlu0 %v1875
        %v1877 = vpop.xlane.xlu0 %1876
        %v1878 = vmul.f32 %v1877, 0.00390625
        %v1879 = vrot.slane %v1817, 3
        %v1881 = vmul.f32 %v1878, %v1879
        %v1882 = vadd.f32 %v1866, %v1881
        %1883 = vst [vmem:[%s247] sm:$0x1] %v1882
        %p1884 = scmp.lt.s32.totalorder %s18, 1
        %s1885 = scalar_select %p1884, %s18, 1
        %s1886 = scalar_lea.vmem %s5, %s1885
        // Predicated region
        $region49: #{rcnn_forward.1} parent=39 // pred_check
          %p1887 = pneg %p146
        $region50: #{rcnn_forward.1} parent=39 // pred_check_branch
          %1889 = sbr.rel (%p1887) target = $region52
        $region51: #{rcnn_forward.1} parent=39 // pred_region
          _
        $region52: #{rcnn_forward.1} parent=39 // pred_fallthru
          _
      $region40: #{rcnn_forward.1} parent=5 // pred_fallthru
        _
      %p1890 = scmp.le.s32.totalorder 2, %s13
      // Predicated region
      $region53: #{rcnn_forward.1} parent=5 // pred_check
        %p1891 = pneg %p1890
      $region54: #{rcnn_forward.1} parent=5 // pred_check_branch
        %1893 = sbr.rel (%p1891) target = $region56
      $region55: #{rcnn_forward.1} parent=5 // pred_region
        %s1894 = ssub.s32 %s13, 2
        // Predicated region
        $region57: #{rcnn_forward.1} parent=55 // pred_check
          %p1895 = pneg %p152
        $region58: #{rcnn_forward.1} parent=55 // pred_check_branch
          %1897 = sbr.rel (%p1895) target = $region60
        $region59: #{rcnn_forward.1} parent=55 // pred_region
          %p1898 = scmp.lt.s32.totalorder %s19, 1
          %s1899 = scalar_select %p1898, %s19, 1
          %s1900 = scalar_lea.vmem %s5, %s1899
        $region60: #{rcnn_forward.1} parent=55 // pred_fallthru
          _
      $region56: #{rcnn_forward.1} parent=5 // pred_fallthru
        _
    $region6: #{rcnn_forward.1} parent=1 // loop_footer
      %s17 = sadd.s32 1, %s13
    $region7: #{rcnn_forward.1} parent=1 // loop_footer_branch
      %12 = sbr.rel target = $region3
    $region8: #{rcnn_forward.1} parent=1 // loop_exit
      _
    %1901 = vsyncpa [#allocation3], 1
    %s1902 = scalar_lea.sflag [#allocation3], 1
    %1903 = vsyncpa %s1902, 1
    %1904 = vsyncpa [#allocation5], 1

</llo_original>
